<compile_context>
chip_gen: v7x
topology: tpu7x:2x2x1
jax: 0.10.0
libtpu: 0.0.40
codegen_flags: <defaults>
</compile_context>

<pallas_src>
import functools

import jax
import jax.numpy as jnp
import numpy as np
from jax.experimental import pallas as pl
from jax.experimental.pallas import tpu as pltpu


# ---------------- View module equivalent (pure reshape, no kernel) ----------------

def view(x, *shape):
    """Equivalent of the PyTorch `View` module's forward: a metadata reshape."""
    return jnp.reshape(x, shape)


# ---------------- fused Pallas kernel ----------------

def _fused_self_attn_kernel(gamma_ref, x_ref, w_ref, o_ref, *, B, H, W, C):
    # gamma_ref: (1,)          f32   residual gate (SMEM scalar)
    # x_ref    : (B, C, HW)    f32   NCHW activation, spatial flattened (free reshape)
    # w_ref    : (C + C/2, C)  bf16  packed weights:
    #              rows [0:C)      lanes [0:NP) = [theta.T | phi.T | g.T], rest zero
    #              rows [C:C+C/2)  = w_o.T  (C/2, C)
    # o_ref    : (B, C, HW)    f32   output in the same NCHW-flattened layout as x
    HW = H * W
    H2, W2 = H // 2, W // 2
    HW4 = HW // 4
    C8, C2 = C // 8, C // 2
    NP = 2 * C8 + C2                                   # fused [theta|phi|g] width

    # --- weights: two aligned static windows of the single packed operand ---
    w_proj = w_ref[0:C, 0:NP]                          # (C, NP)  bf16
    wo_t = w_ref[C:C + C2, :]                          # (C2, C)  bf16

    # --- channels-last bf16 copy of x for the MXU; the f32 activation is NOT
    #     kept live (the residual re-reads x_ref at the very end). ---
    x_cl = jnp.transpose(x_ref[...], (0, 2, 1)).astype(jnp.bfloat16)   # (B, HW, C)

    # --- fused 1x1-conv projections: one (B*HW, C) @ (C, NP) MXU push, M = 128 ---
    proj = jnp.dot(x_cl.reshape(B * HW, C), w_proj,
                   preferred_element_type=jnp.float32).reshape(B, HW, NP)
    theta = proj[:, :, :C8].astype(jnp.bfloat16)       # (B, HW, C8)
    phi = proj[:, :, C8:2 * C8]                        # (B, HW, C8) f32
    g = proj[:, :, 2 * C8:]                            # (B, HW, C2) f32

    # --- 2x2 spatial max-pool on the natural (h*W + w) row order:
    #     two pairwise maxes (w-pairs, then h-pairs), no gathers ---
    def pool2x2(t):
        c = t.shape[-1]
        t = t.reshape(B, HW // 2, 2, c)
        t = jnp.maximum(t[:, :, 0, :], t[:, :, 1, :])          # (B, H*W2, c)
        t = t.reshape(B * H2, 2, W2, c)
        t = jnp.maximum(t[:, 0, :, :], t[:, 1, :, :])          # (B*H2, W2, c)
        return t.reshape(B, HW4, c)

    phi_p = pool2x2(phi).astype(jnp.bfloat16)          # (B, HW4, C8)
    g_p = pool2x2(g).astype(jnp.bfloat16)              # (B, HW4, C2)

    # --- attention logits, contracting C/8 directly (no materialized phi^T) ---
    logits = jnp.einsum('bqc,bkc->bqk', theta, phi_p,
                        preferred_element_type=jnp.float32)    # (B, HW, HW4)

    # --- softmax with deferred normalization; gamma folded into the scale ---
    m = jnp.max(logits, axis=-1, keepdims=True)
    p = jnp.exp(logits - m)                            # un-normalized probs
    denom = jnp.sum(p, axis=-1, keepdims=True)         # >= 1 after max-subtraction
    scale = gamma_ref[0] * pl.reciprocal(denom, approx=True)   # (B, HW, 1), EUP

    o_in = jnp.einsum('bqk,bkc->bqc', p.astype(jnp.bfloat16), g_p,
                      preferred_element_type=jnp.float32)      # (B, HW, C2)
    o_in = (o_in * scale).astype(jnp.bfloat16)         # gamma==0 -> exact zeros

    # --- output 1x1-conv projection (M = B*HW = 128), back to channels-first ---
    o_cl = jnp.dot(o_in.reshape(B * HW, C2), wo_t,
                   preferred_element_type=jnp.float32).reshape(B, HW, C)
    o_cf = jnp.transpose(o_cl, (0, 2, 1))              # (B, C, HW)

    # gamma already applied via `scale`; residual re-reads x (f32, exact identity
    # when gamma == 0).  Output layout matches NCHW so the wrapper only reshapes.
    o_ref[...] = o_cf + x_ref[...]


# ---------------- parameter packing (one-off, at load time) ----------------

def pack_self_attention_params(w_theta, w_phi, w_g, w_o):
    """Pack the four 1x1-conv weights into a single bf16 VMEM operand.

    Do this ONCE at parameter-load time (not per forward call): it removes the
    per-call transpose/concat/cast XLA glue and cuts the kernel to a single
    weight input DMA.
    """
    C = w_theta.shape[1]
    C2 = C // 2
    NP = w_theta.shape[0] + w_phi.shape[0] + w_g.shape[0]      # 2*C/8 + C/2
    w_proj = jnp.concatenate([w_theta.T, w_phi.T, w_g.T], axis=1)   # (C, NP)
    w_proj = jnp.pad(w_proj, ((0, 0), (0, C - NP)))                 # (C, C)
    return jnp.concatenate([w_proj, w_o.T], axis=0).astype(jnp.bfloat16)  # (C+C2, C)


# ---------------- wrapper (jit-able forward) ----------------

def self_attention_forward(x_nchw, w_packed, gamma_arr):
    B, C, H, W = x_nchw.shape
    HW = H * W
    x_flat = view(x_nchw.astype(jnp.float32), B, C, HW)   # bitcast reshape, free

    kernel = functools.partial(_fused_self_attn_kernel, B=B, H=H, W=W, C=C)

    out_flat = pl.pallas_call(
        kernel,
        out_shape=jax.ShapeDtypeStruct((B, C, HW), jnp.float32),
        in_specs=[pl.BlockSpec(memory_space=pltpu.MemorySpace.SMEM),   # gamma
                  pl.BlockSpec(memory_space=pltpu.MemorySpace.VMEM),   # x
                  pl.BlockSpec(memory_space=pltpu.MemorySpace.VMEM)],  # packed weights
        out_specs=pl.BlockSpec(memory_space=pltpu.MemorySpace.VMEM),
    )(gamma_arr, x_flat, w_packed)

    return view(out_flat, B, C, H, W)                  # bitcast reshape, free


# ---------------- pure-JAX reference (mirrors the PyTorch forward) ----------------

def self_attention_reference(x_nchw, w_theta, w_phi, w_g, w_o, gamma):
    B, C, H, W = x_nchw.shape

    def conv1x1(w, t):
        return jnp.einsum('oc,bchw->bohw', w, t)

    def pool2(t):
        b, c, h, w = t.shape
        return jnp.max(t.reshape(b, c, h // 2, 2, w // 2, 2), axis=(3, 5))

    theta = conv1x1(w_theta, x_nchw).reshape(B, C // 8, H * W).transpose(0, 2, 1)
    phi = pool2(conv1x1(w_phi, x_nchw)).reshape(B, C // 8, H * W // 4)
    beta = jax.nn.softmax(theta @ phi, axis=-1).transpose(0, 2, 1)
    g = pool2(conv1x1(w_g, x_nchw)).reshape(B, C // 2, H * W // 4)
    o = conv1x1(w_o, (g @ beta).reshape(B, C // 2, H, W))
    return gamma * o + x_nchw


if __name__ == "__main__":
    B, C, H, W = 2, 64, 8, 8   # dim_h = 64 (must be divisible by 8)
    key = jax.random.PRNGKey(0)
    kx, k1, k2, k3, k4 = jax.random.split(key, 5)
    x = jax.random.normal(kx, (B, C, H, W), jnp.float32)
    # deterministic synthetic weights; shapes per nn.Conv2d(..., kernel_size=1, bias=False)
    w_theta = 0.05 * jax.random.normal(k1, (C // 8, C), jnp.float32)  # (C/8, C)
    w_phi = 0.05 * jax.random.normal(k2, (C // 8, C), jnp.float32)    # (C/8, C)
    w_g = 0.05 * jax.random.normal(k3, (C // 2, C), jnp.float32)      # (C/2, C)
    w_o = 0.05 * jax.random.normal(k4, (C, C // 2), jnp.float32)      # (C,   C/2)

    # One-off parameter packing, hoisted out of the per-call jitted path.
    w_packed = jax.block_until_ready(
        pack_self_attention_params(w_theta, w_phi, w_g, w_o))

    fwd = jax.jit(self_attention_forward)

    # gamma == 0 (module init): the forward must be an exact identity.
    gamma0 = jnp.zeros((1,), jnp.float32)
    out = jax.block_until_ready(fwd(x, w_packed, gamma0))
    assert out.shape == x.shape
    np.testing.assert_allclose(np.asarray(out), np.asarray(x), rtol=1e-5, atol=1e-5)

    # Full attention path vs. the pure-JAX reference with nonzero gamma
    # (tolerance admits the bf16 MXU inputs / approx reciprocal).
    gamma_nz = jnp.full((1,), 0.5, jnp.float32)
    out_nz = jax.block_until_ready(fwd(x, w_packed, gamma_nz))
    ref_nz = self_attention_reference(x, w_theta, w_phi, w_g, w_o, 0.5)
    np.testing.assert_allclose(np.asarray(out_nz), np.asarray(ref_nz),
                               rtol=2e-2, atol=2e-2)

    print("KERNEL_OK")
</pallas_src>

<mosaic_0001>
module attributes {stable_mosaic.version = 11 : i64} {
  func.func @_fused_self_attn_kernel(%arg0: memref<1xf32, #tpu.memory_space<smem>>, %arg1: memref<2x64x64xf32, #tpu.memory_space<vmem>>, %arg2: memref<96x64xbf16, #tpu.memory_space<vmem>>, %arg3: memref<2x64x64xf32, #tpu.memory_space<vmem>>) attributes {dimension_semantics = [], scalar_prefetch = 0 : i64, scratch_operands = 0 : i64, tpu.core_type = #tpu.core_type<tc>} {
    %c0 = arith.constant 0 : index
    %c0_0 = arith.constant 0 : index
    %0 = vector.load %arg2[%c0, %c0_0] : memref<96x64xbf16, #tpu.memory_space<vmem>>, vector<64x48xbf16>
    %c64 = arith.constant 64 : index
    %c0_1 = arith.constant 0 : index
    %1 = vector.load %arg2[%c64, %c0_1] : memref<96x64xbf16, #tpu.memory_space<vmem>>, vector<32x64xbf16>
    %c0_2 = arith.constant 0 : index
    %c0_3 = arith.constant 0 : index
    %c0_4 = arith.constant 0 : index
    %2 = vector.load %arg1[%c0_2, %c0_3, %c0_4] : memref<2x64x64xf32, #tpu.memory_space<vmem>>, vector<2x64x64xf32>
    %3 = tpu.transpose %2, [0, 2, 1] : vector<2x64x64xf32> -> vector<2x64x64xf32>
    %4 = arith.truncf %3 : vector<2x64x64xf32> to vector<2x64x64xbf16>
    %5 = vector.shape_cast %4 : vector<2x64x64xbf16> to vector<128x64xbf16>
    %cst = arith.constant dense<0.000000e+00> : vector<128x48xf32>
    %6 = tpu.matmul %5, %0, %cst {dimension_numbers = #tpu.dot_dimension_numbers<[1], [0], [0], [1], [0, 0, 1, 1], [], []>} : vector<128x64xbf16>, vector<64x48xbf16>, vector<128x48xf32> -> vector<128x48xf32>
    %7 = vector.shape_cast %6 : vector<128x48xf32> to vector<2x64x48xf32>
    %8 = vector.extract_strided_slice %7 {offsets = [0, 0, 0], sizes = [2, 64, 8], strides = [1, 1, 1]} : vector<2x64x48xf32> to vector<2x64x8xf32>
    %9 = arith.truncf %8 : vector<2x64x8xf32> to vector<2x64x8xbf16>
    %10 = vector.extract_strided_slice %7 {offsets = [0, 0, 8], sizes = [2, 64, 8], strides = [1, 1, 1]} : vector<2x64x48xf32> to vector<2x64x8xf32>
    %11 = vector.extract_strided_slice %7 {offsets = [0, 0, 16], sizes = [2, 64, 32], strides = [1, 1, 1]} : vector<2x64x48xf32> to vector<2x64x32xf32>
    %12 = vector.shape_cast %10 : vector<2x64x8xf32> to vector<2x32x2x8xf32>
    %13 = vector.extract_strided_slice %12 {offsets = [0, 0, 0, 0], sizes = [2, 32, 1, 8], strides = [1, 1, 1, 1]} : vector<2x32x2x8xf32> to vector<2x32x1x8xf32>
    %14 = vector.shape_cast %13 : vector<2x32x1x8xf32> to vector<2x32x8xf32>
    %15 = vector.extract_strided_slice %12 {offsets = [0, 0, 1, 0], sizes = [2, 32, 1, 8], strides = [1, 1, 1, 1]} : vector<2x32x2x8xf32> to vector<2x32x1x8xf32>
    %16 = vector.shape_cast %15 : vector<2x32x1x8xf32> to vector<2x32x8xf32>
    %17 = arith.maximumf %14, %16 : vector<2x32x8xf32>
    %18 = vector.shape_cast %17 : vector<2x32x8xf32> to vector<8x2x4x8xf32>
    %19 = vector.extract_strided_slice %18 {offsets = [0, 0, 0, 0], sizes = [8, 1, 4, 8], strides = [1, 1, 1, 1]} : vector<8x2x4x8xf32> to vector<8x1x4x8xf32>
    %20 = vector.shape_cast %19 : vector<8x1x4x8xf32> to vector<8x4x8xf32>
    %21 = vector.extract_strided_slice %18 {offsets = [0, 1, 0, 0], sizes = [8, 1, 4, 8], strides = [1, 1, 1, 1]} : vector<8x2x4x8xf32> to vector<8x1x4x8xf32>
    %22 = vector.shape_cast %21 : vector<8x1x4x8xf32> to vector<8x4x8xf32>
    %23 = arith.maximumf %20, %22 : vector<8x4x8xf32>
    %24 = vector.shape_cast %23 : vector<8x4x8xf32> to vector<2x16x8xf32>
    %25 = arith.truncf %24 : vector<2x16x8xf32> to vector<2x16x8xbf16>
    %26 = vector.shape_cast %11 : vector<2x64x32xf32> to vector<2x32x2x32xf32>
    %27 = vector.extract_strided_slice %26 {offsets = [0, 0, 0, 0], sizes = [2, 32, 1, 32], strides = [1, 1, 1, 1]} : vector<2x32x2x32xf32> to vector<2x32x1x32xf32>
    %28 = vector.shape_cast %27 : vector<2x32x1x32xf32> to vector<2x32x32xf32>
    %29 = vector.extract_strided_slice %26 {offsets = [0, 0, 1, 0], sizes = [2, 32, 1, 32], strides = [1, 1, 1, 1]} : vector<2x32x2x32xf32> to vector<2x32x1x32xf32>
    %30 = vector.shape_cast %29 : vector<2x32x1x32xf32> to vector<2x32x32xf32>
    %31 = arith.maximumf %28, %30 : vector<2x32x32xf32>
    %32 = vector.shape_cast %31 : vector<2x32x32xf32> to vector<8x2x4x32xf32>
    %33 = vector.extract_strided_slice %32 {offsets = [0, 0, 0, 0], sizes = [8, 1, 4, 32], strides = [1, 1, 1, 1]} : vector<8x2x4x32xf32> to vector<8x1x4x32xf32>
    %34 = vector.shape_cast %33 : vector<8x1x4x32xf32> to vector<8x4x32xf32>
    %35 = vector.extract_strided_slice %32 {offsets = [0, 1, 0, 0], sizes = [8, 1, 4, 32], strides = [1, 1, 1, 1]} : vector<8x2x4x32xf32> to vector<8x1x4x32xf32>
    %36 = vector.shape_cast %35 : vector<8x1x4x32xf32> to vector<8x4x32xf32>
    %37 = arith.maximumf %34, %36 : vector<8x4x32xf32>
    %38 = vector.shape_cast %37 : vector<8x4x32xf32> to vector<2x16x32xf32>
    %39 = arith.truncf %38 : vector<2x16x32xf32> to vector<2x16x32xbf16>
    "tpu.trace_start"() <{level = 10 : i32, message = "bqc,bkc->bqk"}> : () -> ()
    %cst_5 = arith.constant dense<0.000000e+00> : vector<2x64x16xf32>
    %40 = tpu.matmul %9, %25, %cst_5 {dimension_numbers = #tpu.dot_dimension_numbers<[2], [2], [1], [1], [0, 0, 0, 1, 1, 1], [0], [0]>} : vector<2x64x8xbf16>, vector<2x16x8xbf16>, vector<2x64x16xf32> -> vector<2x64x16xf32>
    "tpu.trace_stop"() : () -> ()
    %cst_6 = arith.constant dense<0xFF800000> : vector<2x64xf32>
    %41 = vector.multi_reduction <maximumf>, %40, %cst_6 [2] : vector<2x64x16xf32> to vector<2x64xf32>
    %42 = vector.shape_cast %41 : vector<2x64xf32> to vector<2x64x1xf32>
    %43 = vector.broadcast %42 : vector<2x64x1xf32> to vector<2x64x16xf32>
    %44 = arith.subf %40, %43 : vector<2x64x16xf32>
    %45 = math.exp %44 : vector<2x64x16xf32>
    %cst_7 = arith.constant dense<0.000000e+00> : vector<2x64xf32>
    %46 = vector.multi_reduction <add>, %45, %cst_7 [2] : vector<2x64x16xf32> to vector<2x64xf32>
    %47 = vector.shape_cast %46 : vector<2x64xf32> to vector<2x64x1xf32>
    %c0_8 = arith.constant 0 : index
    %48 = memref.load %arg0[%c0_8] : memref<1xf32, #tpu.memory_space<smem>>
    %49 = tpu.reciprocal %47 {approx = true} : vector<2x64x1xf32> -> vector<2x64x1xf32>
    %50 = vector.broadcast %48 : f32 to vector<2x64x1xf32>
    %51 = arith.mulf %50, %49 : vector<2x64x1xf32>
    %52 = arith.truncf %45 : vector<2x64x16xf32> to vector<2x64x16xbf16>
    "tpu.trace_start"() <{level = 10 : i32, message = "bqk,bkc->bqc"}> : () -> ()
    %cst_9 = arith.constant dense<0.000000e+00> : vector<2x64x32xf32>
    %53 = tpu.matmul %52, %39, %cst_9 {dimension_numbers = #tpu.dot_dimension_numbers<[2], [1], [1], [2], [0, 0, 0, 1, 1, 2], [0], [0]>} : vector<2x64x16xbf16>, vector<2x16x32xbf16>, vector<2x64x32xf32> -> vector<2x64x32xf32>
    "tpu.trace_stop"() : () -> ()
    %54 = vector.broadcast %51 : vector<2x64x1xf32> to vector<2x64x32xf32>
    %55 = arith.mulf %53, %54 : vector<2x64x32xf32>
    %56 = arith.truncf %55 : vector<2x64x32xf32> to vector<2x64x32xbf16>
    %57 = vector.shape_cast %56 : vector<2x64x32xbf16> to vector<128x32xbf16>
    %cst_10 = arith.constant dense<0.000000e+00> : vector<128x64xf32>
    %58 = tpu.matmul %57, %1, %cst_10 {dimension_numbers = #tpu.dot_dimension_numbers<[1], [0], [0], [1], [0, 0, 1, 1], [], []>} : vector<128x32xbf16>, vector<32x64xbf16>, vector<128x64xf32> -> vector<128x64xf32>
    %59 = vector.shape_cast %58 : vector<128x64xf32> to vector<2x64x64xf32>
    %60 = tpu.transpose %59, [0, 2, 1] : vector<2x64x64xf32> -> vector<2x64x64xf32>
    %c0_11 = arith.constant 0 : index
    %c0_12 = arith.constant 0 : index
    %c0_13 = arith.constant 0 : index
    %61 = vector.load %arg1[%c0_11, %c0_12, %c0_13] : memref<2x64x64xf32, #tpu.memory_space<vmem>>, vector<2x64x64xf32>
    %62 = arith.addf %60, %61 : vector<2x64x64xf32>
    %c0_14 = arith.constant 0 : index
    %c0_15 = arith.constant 0 : index
    %c0_16 = arith.constant 0 : index
    %63 = vector.load %arg3[%c0_14, %c0_15, %c0_16] : memref<2x64x64xf32, #tpu.memory_space<vmem>>, vector<2x64x64xf32>
    tpu.vector_store %arg3[%c0_14, %c0_15, %c0_16], %62 {strides = array<i32>} : memref<2x64x64xf32, #tpu.memory_space<vmem>>, vector<2x64x64xf32>,
    return
  }
}

</mosaic_0001>

<llo_original>
// kernel: self_attention_forward.1
$region0: #{self_attention_forward.1}
  #allocation0 [shape = 'u32[]', space=smem, size = 0x4, offset = 0x4, fixed_abs, tag = 'smem constant byte address 0x4 - core index']
  #allocation1 [shape = 'u32[144,128]{1,0:T(1,128)}', space=vmem, size = 0x12000, scoped, tag = 'internal scratch']
  #allocation2 [shape = 'f32[1]{0:T(128)S(6)}', space=smem, size = 0x200, scoped, tag = 'scoped memory for self_attention_forward.1']
  %s0 = inlined_call_operand.<no memory space> [shape: f32[1], index: 0, kind: input, shape index: {}]
  %s1 = inlined_call_operand.vmem [shape: f32[2,64,64], index: 1, kind: input, shape index: {}]
  %s2 = inlined_call_operand.vmem [shape: bf16[96,64], index: 2, kind: input, shape index: {}]
  %s3 = inlined_call_operand.vmem [shape: f32[2,64,64], index: 3, kind: output, shape index: {}]
  %s4 = sld [smem:[#allocation0]]
  $region22: #{self_attention_forward.1} parent=0
    _
  %s6 = ssub.s32 1, %s4
  %s7 = scalar_select 0, %s6, %s4
  %8 = sst [smem:[#allocation2]] %s0
  // Predicated region
  $region2: #{self_attention_forward.1} parent=0 // pred_check
    _
  $region3: #{self_attention_forward.1} parent=0 // pred_check_branch
    %10 = sbr.rel (0) target = $region5
  $region4: #{self_attention_forward.1} parent=0 // pred_region
    _
  $region5: #{self_attention_forward.1} parent=0 // pred_fallthru
    _
  // Predicated region
  $region6: #{self_attention_forward.1} parent=0 // pred_check
    _
  $region7: #{self_attention_forward.1} parent=0 // pred_check_branch
    %12 = sbr.rel (0) target = $region9
  $region8: #{self_attention_forward.1} parent=0 // pred_region
    _
  $region9: #{self_attention_forward.1} parent=0 // pred_fallthru
    _
  // Predicated region
  $region10: #{self_attention_forward.1} parent=0 // pred_check
    _
  $region11: #{self_attention_forward.1} parent=0 // pred_check_branch
    %14 = sbr.rel (0) target = $region13
  $region12: #{self_attention_forward.1} parent=0 // pred_region
    _
  $region13: #{self_attention_forward.1} parent=0 // pred_fallthru
    _
  %v16 = vld [vmem:[%s2] sm:$0xf]
  %v17 = vld [vmem:[%s2 + $0x4] sm:$0xf]
  %v18 = vld [vmem:[%s2 + $0x8] sm:$0xf]
  %v19 = vld [vmem:[%s2 + $0xc] sm:$0xf]
  %v20 = vld [vmem:[%s2 + $0x10] sm:$0xf]
  %v21 = vld [vmem:[%s2 + $0x14] sm:$0xf]
  %v22 = vld [vmem:[%s2 + $0x18] sm:$0xf]
  %v23 = vld [vmem:[%s2 + $0x1c] sm:$0xf]
  %v24 = vld [vmem:[%s2 + $0x20] sm:$0xf]
  %v25 = vld [vmem:[%s2 + $0x24] sm:$0xf]
  %v26 = vld [vmem:[%s2 + $0x28] sm:$0xf]
  %v27 = vld [vmem:[%s2 + $0x2c] sm:$0xf]
  %v28 = vld [vmem:[%s1] sm:$0xff]
  %v29 = vld [vmem:[%s1 + $0x8] sm:$0xff]
  %v30 = vld [vmem:[%s1 + $0x10] sm:$0xff]
  %v31 = vld [vmem:[%s1 + $0x18] sm:$0xff]
  %v32 = vld [vmem:[%s1 + $0x20] sm:$0xff]
  %v33 = vld [vmem:[%s1 + $0x28] sm:$0xff]
  %v34 = vld [vmem:[%s1 + $0x30] sm:$0xff]
  %v35 = vld [vmem:[%s1 + $0x38] sm:$0xff]
  %v36 = vld [vmem:[%s1 + $0x40] sm:$0xff]
  %v37 = vld [vmem:[%s1 + $0x48] sm:$0xff]
  %v38 = vld [vmem:[%s1 + $0x50] sm:$0xff]
  %v39 = vld [vmem:[%s1 + $0x58] sm:$0xff]
  %v40 = vld [vmem:[%s1 + $0x60] sm:$0xff]
  %v41 = vld [vmem:[%s1 + $0x68] sm:$0xff]
  %v42 = vld [vmem:[%s1 + $0x70] sm:$0xff]
  %v43 = vld [vmem:[%s1 + $0x78] sm:$0xff]
  %44 = vxpose.xlu0.b32.start [1/16] %v28, 128
  %45 = vxpose.xlu0.b32.cont [2/16] %v29, 128
  %46 = vxpose.xlu0.b32.cont [3/16] %v30, 128
  %47 = vxpose.xlu0.b32.cont [4/16] %v31, 128
  %48 = vxpose.xlu0.b32.cont [5/16] %v32, 128
  %49 = vxpose.xlu0.b32.cont [6/16] %v33, 128
  %50 = vxpose.xlu0.b32.cont [7/16] %v34, 128
  %51 = vxpose.xlu0.b32.cont [8/16] %v35, 128
  %52 = vxpose.xlu0.b32.cont [9/16] 0.0, 128
  %53 = vxpose.xlu0.b32.cont [10/16] 0.0, 128
  %54 = vxpose.xlu0.b32.cont [11/16] 0.0, 128
  %55 = vxpose.xlu0.b32.cont [12/16] 0.0, 128
  %56 = vxpose.xlu0.b32.cont [13/16] 0.0, 128
  %57 = vxpose.xlu0.b32.cont [14/16] 0.0, 128
  %58 = vxpose.xlu0.b32.cont [15/16] 0.0, 128
  %59 = vxpose.xlu0.b32.end [16/16] 0.0, 128
  %v60 = vpop.trf.xlu0
  %v61 = vpop.trf.xlu0
  %v62 = vpop.trf.xlu0
  %v63 = vpop.trf.xlu0
  %v64 = vpop.trf.xlu0
  %v65 = vpop.trf.xlu0
  %v66 = vpop.trf.xlu0
  %v67 = vpop.trf.xlu0
  %v68 = vpop.trf.xlu0
  %v69 = vpop.trf.xlu0
  %v70 = vpop.trf.xlu0
  %v71 = vpop.trf.xlu0
  %v72 = vpop.trf.xlu0
  %v73 = vpop.trf.xlu0
  %v74 = vpop.trf.xlu0
  %v75 = vpop.trf.xlu0
  %76 = vxpose.xlu0.b32.start [1/16] %v36, 128
  %77 = vxpose.xlu0.b32.cont [2/16] %v37, 128
  %78 = vxpose.xlu0.b32.cont [3/16] %v38, 128
  %79 = vxpose.xlu0.b32.cont [4/16] %v39, 128
  %80 = vxpose.xlu0.b32.cont [5/16] %v40, 128
  %81 = vxpose.xlu0.b32.cont [6/16] %v41, 128
  %82 = vxpose.xlu0.b32.cont [7/16] %v42, 128
  %83 = vxpose.xlu0.b32.cont [8/16] %v43, 128
  %84 = vxpose.xlu0.b32.cont [9/16] 0.0, 128
  %85 = vxpose.xlu0.b32.cont [10/16] 0.0, 128
  %86 = vxpose.xlu0.b32.cont [11/16] 0.0, 128
  %87 = vxpose.xlu0.b32.cont [12/16] 0.0, 128
  %88 = vxpose.xlu0.b32.cont [13/16] 0.0, 128
  %89 = vxpose.xlu0.b32.cont [14/16] 0.0, 128
  %90 = vxpose.xlu0.b32.cont [15/16] 0.0, 128
  %91 = vxpose.xlu0.b32.end [16/16] 0.0, 128
  %v92 = vpop.trf.xlu0
  %v93 = vpop.trf.xlu0
  %v94 = vpop.trf.xlu0
  %v95 = vpop.trf.xlu0
  %v96 = vpop.trf.xlu0
  %v97 = vpop.trf.xlu0
  %v98 = vpop.trf.xlu0
  %v99 = vpop.trf.xlu0
  %v100 = vpop.trf.xlu0
  %v101 = vpop.trf.xlu0
  %v102 = vpop.trf.xlu0
  %v103 = vpop.trf.xlu0
  %v104 = vpop.trf.xlu0
  %v105 = vpop.trf.xlu0
  %v106 = vpop.trf.xlu0
  %v107 = vpop.trf.xlu0
  %v108 = vpack.c.bf16 %v61, %v60
  %v109 = vpack.c.bf16 %v63, %v62
  %v110 = vpack.c.bf16 %v65, %v64
  %v111 = vpack.c.bf16 %v67, %v66
  %v112 = vpack.c.bf16 %v93, %v92
  %v113 = vpack.c.bf16 %v95, %v94
  %v114 = vpack.c.bf16 %v97, %v96
  %v115 = vpack.c.bf16 %v99, %v98
  %v124 = vunpack.c.l.b16 %v16
  %v125 = vunpack.c.l.b16 %v17
  %v126 = vunpack.c.l.b16 %v18
  %v127 = vunpack.c.l.b16 %v19
  %v128 = vunpack.c.l.b16 %v20
  %v129 = vunpack.c.l.b16 %v21
  %v130 = vunpack.c.l.b16 %v22
  %v131 = vunpack.c.l.b16 %v23
  %v132 = vpack.c.b16 %v125, %v124
  %v133 = vpack.c.b16 %v127, %v126
  %v134 = vpack.c.b16 %v129, %v128
  %v135 = vpack.c.b16 %v131, %v130
  %vm140 = vcmask 523264
  %v142 = vsel %vm140, %v108, 0
  %v145 = vsel %vm140, %v109, 0
  %v148 = vsel %vm140, %v110, 0
  %v151 = vsel %vm140, %v111, 0
  %v154 = vsel %vm140, %v112, 0
  %v157 = vsel %vm140, %v113, 0
  %v160 = vsel %vm140, %v114, 0
  %v163 = vsel %vm140, %v115, 0
  %165 = vmatprep.subr.bf16.mxu0 0
  %166 = vmatpush1.bf16.msra.mxu0 %v132
  %167 = vmatprep.subr.bf16.mxu0 0
  %168 = vmatpush1.bf16.msra.mxu0 %v133
  %169 = vmatprep.subr.bf16.mxu0 0
  %170 = vmatpush1.bf16.msra.mxu0 %v134
  %171 = vmatprep.subr.bf16.mxu0 0
  %172 = vmatpush1.bf16.msra.mxu0 %v135
  %173 = vmatprep.subr.bf16.mxu0 0
  %174 = vmatpush1.bf16.msra.mxu0 0
  %175 = vmatprep.subr.bf16.mxu0 0
  %176 = vmatpush1.bf16.msra.mxu0 0
  %177 = vmatprep.subr.bf16.mxu0 0
  %178 = vmatpush1.bf16.msra.mxu0 0
  %179 = vmatprep.subr.bf16.mxu0 0
  %180 = vmatpush1.bf16.msra.mxu0 0
  %181 = vmatprep.subr.bf16.mxu0 0
  %182 = vmatpush1.bf16.msra.mxu0 0
  %183 = vmatprep.subr.bf16.mxu0 0
  %184 = vmatpush1.bf16.msra.mxu0 0
  %185 = vmatprep.subr.bf16.mxu0 0
  %186 = vmatpush1.bf16.msra.mxu0 0
  %187 = vmatprep.subr.bf16.mxu0 0
  %188 = vmatpush1.bf16.msra.mxu0 0
  %189 = vmatprep.subr.bf16.mxu0 0
  %190 = vmatpush1.bf16.msra.mxu0 0
  %191 = vmatprep.subr.bf16.mxu0 0
  %192 = vmatpush1.bf16.msra.mxu0 0
  %193 = vmatprep.subr.bf16.mxu0 0
  %194 = vmatpush1.bf16.msra.mxu0 0
  %195 = vmatprep.subr.bf16.mxu0 0
  %196 = vmatpush1.bf16.msra.mxu0 0
  %197 = vmatprep.mubr.bf16.mxu0 0
  %198 = vmatmul.mubr.bf16.gmra.mrb[0].mxu0 %v142
  %v199 = vpop.f32.mrb[0].mxu0
  %v200 = vadd.f32 0.0, %v199
  %v201 = vpop.f32.mrb[0].mxu0
  %v202 = vpop.f32.mrb[0].mxu0
  %v203 = vadd.f32 0.0, %v202
  %v204 = vpop.f32.mrb[0].mxu0
  %205 = vmatprep.mubr.bf16.mxu0 0
  %206 = vmatmul.mubr.bf16.gmra.mrb[0].mxu0 %v145
  %v207 = vpop.f32.mrb[0].mxu0
  %v208 = vadd.f32 0.0, %v207
  %v209 = vpop.f32.mrb[0].mxu0
  %v210 = vpop.f32.mrb[0].mxu0
  %v211 = vadd.f32 0.0, %v210
  %v212 = vpop.f32.mrb[0].mxu0
  %213 = vmatprep.mubr.bf16.mxu0 0
  %214 = vmatmul.mubr.bf16.gmra.mrb[0].mxu0 %v148
  %v215 = vpop.f32.mrb[0].mxu0
  %v216 = vadd.f32 0.0, %v215
  %v217 = vpop.f32.mrb[0].mxu0
  %v218 = vpop.f32.mrb[0].mxu0
  %v219 = vadd.f32 0.0, %v218
  %v220 = vpop.f32.mrb[0].mxu0
  %221 = vmatprep.mubr.bf16.mxu0 0
  %222 = vmatmul.mubr.bf16.gmra.mrb[0].mxu0 %v151
  %v223 = vpop.f32.mrb[0].mxu0
  %v224 = vadd.f32 0.0, %v223
  %v225 = vpop.f32.mrb[0].mxu0
  %v226 = vpop.f32.mrb[0].mxu0
  %v227 = vadd.f32 0.0, %v226
  %v228 = vpop.f32.mrb[0].mxu0
  %229 = vmatprep.mubr.bf16.mxu0 0
  %230 = vmatmul.mubr.bf16.gmra.mrb[0].mxu0 %v154
  %v231 = vpop.f32.mrb[0].mxu0
  %v232 = vadd.f32 0.0, %v231
  %v233 = vpop.f32.mrb[0].mxu0
  %v234 = vpop.f32.mrb[0].mxu0
  %v235 = vadd.f32 0.0, %v234
  %v236 = vpop.f32.mrb[0].mxu0
  %237 = vmatprep.mubr.bf16.mxu0 0
  %238 = vmatmul.mubr.bf16.gmra.mrb[0].mxu0 %v157
  %v239 = vpop.f32.mrb[0].mxu0
  %v240 = vadd.f32 0.0, %v239
  %v241 = vpop.f32.mrb[0].mxu0
  %v242 = vpop.f32.mrb[0].mxu0
  %v243 = vadd.f32 0.0, %v242
  %v244 = vpop.f32.mrb[0].mxu0
  %245 = vmatprep.mubr.bf16.mxu0 0
  %246 = vmatmul.mubr.bf16.gmra.mrb[0].mxu0 %v160
  %v247 = vpop.f32.mrb[0].mxu0
  %v248 = vadd.f32 0.0, %v247
  %v249 = vpop.f32.mrb[0].mxu0
  %v250 = vpop.f32.mrb[0].mxu0
  %v251 = vadd.f32 0.0, %v250
  %v252 = vpop.f32.mrb[0].mxu0
  %253 = vmatprep.mubr.bf16.mxu0 0
  %254 = vmatmul.mubr.bf16.gmra.mrb[0].mxu0 %v163
  %v255 = vpop.f32.mrb[0].mxu0
  %v256 = vadd.f32 0.0, %v255
  %v257 = vpop.f32.mrb[0].mxu0
  %v258 = vpop.f32.mrb[0].mxu0
  %v259 = vadd.f32 0.0, %v258
  %v260 = vpop.f32.mrb[0].mxu0
  %261 = vdwg.mxu0
  %v262 = vpack.c.bf16 %v203, %v200
  %v263 = vpack.c.bf16 %v211, %v208
  %v264 = vpack.c.bf16 %v219, %v216
  %v265 = vpack.c.bf16 %v227, %v224
  %v266 = vpack.c.bf16 %v235, %v232
  %v267 = vpack.c.bf16 %v243, %v240
  %v268 = vpack.c.bf16 %v251, %v248
  %v269 = vpack.c.bf16 %v259, %v256
  %v286 = vcombine.high %v200, %v200
  %v288 = vunpack.c.l.s4 1983009808
  %v289 = vunpack.c.0.s8 %v288
  %v290 = vlaneseq
  %v291 = vshrl.u32 %v290, 7
  %v292 = vsub.s32 %v289, %v291
  %v293 = vrot.slane %v200, %v292
  %v295 = vunpack.c.l.s4 1983009808
  %v296 = vunpack.c.0.s8 %v295
  %v297 = vlaneseq
  %v298 = vshrl.u32 %v297, 7
  %v299 = vsub.s32 %v296, %v298
  %v300 = vrot.slane %v286, %v299
  %v301 = vcombine.high %v293, %v293
  %v302 = vcombine.high %v300, %v300
  %v303 = vcombine.high %v203, %v203
  %v305 = vunpack.c.l.s4 1983009808
  %v306 = vunpack.c.0.s8 %v305
  %v307 = vlaneseq
  %v308 = vshrl.u32 %v307, 7
  %v309 = vsub.s32 %v306, %v308
  %v310 = vrot.slane %v203, %v309
  %v312 = vunpack.c.l.s4 1983009808
  %v313 = vunpack.c.0.s8 %v312
  %v314 = vlaneseq
  %v315 = vshrl.u32 %v314, 7
  %v316 = vsub.s32 %v313, %v315
  %v317 = vrot.slane %v303, %v316
  %v318 = vcombine.high %v310, %v310
  %v319 = vcombine.high %v317, %v317
  %v320 = vcombine.high %v208, %v208
  %v322 = vunpack.c.l.s4 1983009808
  %v323 = vunpack.c.0.s8 %v322
  %v324 = vlaneseq
  %v325 = vshrl.u32 %v324, 7
  %v326 = vsub.s32 %v323, %v325
  %v327 = vrot.slane %v208, %v326
  %v329 = vunpack.c.l.s4 1983009808
  %v330 = vunpack.c.0.s8 %v329
  %v331 = vlaneseq
  %v332 = vshrl.u32 %v331, 7
  %v333 = vsub.s32 %v330, %v332
  %v334 = vrot.slane %v320, %v333
  %v335 = vcombine.high %v327, %v327
  %v336 = vcombine.high %v334, %v334
  %v337 = vcombine.high %v211, %v211
  %v339 = vunpack.c.l.s4 1983009808
  %v340 = vunpack.c.0.s8 %v339
  %v341 = vlaneseq
  %v342 = vshrl.u32 %v341, 7
  %v343 = vsub.s32 %v340, %v342
  %v344 = vrot.slane %v211, %v343
  %v346 = vunpack.c.l.s4 1983009808
  %v347 = vunpack.c.0.s8 %v346
  %v348 = vlaneseq
  %v349 = vshrl.u32 %v348, 7
  %v350 = vsub.s32 %v347, %v349
  %v351 = vrot.slane %v337, %v350
  %v352 = vcombine.high %v344, %v344
  %v353 = vcombine.high %v351, %v351
  %v354 = vcombine.high %v216, %v216
  %v356 = vunpack.c.l.s4 1983009808
  %v357 = vunpack.c.0.s8 %v356
  %v358 = vlaneseq
  %v359 = vshrl.u32 %v358, 7
  %v360 = vsub.s32 %v357, %v359
  %v361 = vrot.slane %v216, %v360
  %v363 = vunpack.c.l.s4 1983009808
  %v364 = vunpack.c.0.s8 %v363
  %v365 = vlaneseq
  %v366 = vshrl.u32 %v365, 7
  %v367 = vsub.s32 %v364, %v366
  %v368 = vrot.slane %v354, %v367
  %v369 = vcombine.high %v361, %v361
  %v370 = vcombine.high %v368, %v368
  %v371 = vcombine.high %v219, %v219
  %v373 = vunpack.c.l.s4 1983009808
  %v374 = vunpack.c.0.s8 %v373
  %v375 = vlaneseq
  %v376 = vshrl.u32 %v375, 7
  %v377 = vsub.s32 %v374, %v376
  %v378 = vrot.slane %v219, %v377
  %v380 = vunpack.c.l.s4 1983009808
  %v381 = vunpack.c.0.s8 %v380
  %v382 = vlaneseq
  %v383 = vshrl.u32 %v382, 7
  %v384 = vsub.s32 %v381, %v383
  %v385 = vrot.slane %v371, %v384
  %v386 = vcombine.high %v378, %v378
  %v387 = vcombine.high %v385, %v385
  %v388 = vcombine.high %v224, %v224
  %v390 = vunpack.c.l.s4 1983009808
  %v391 = vunpack.c.0.s8 %v390
  %v392 = vlaneseq
  %v393 = vshrl.u32 %v392, 7
  %v394 = vsub.s32 %v391, %v393
  %v395 = vrot.slane %v224, %v394
  %v397 = vunpack.c.l.s4 1983009808
  %v398 = vunpack.c.0.s8 %v397
  %v399 = vlaneseq
  %v400 = vshrl.u32 %v399, 7
  %v401 = vsub.s32 %v398, %v400
  %v402 = vrot.slane %v388, %v401
  %v403 = vcombine.high %v395, %v395
  %v404 = vcombine.high %v402, %v402
  %v405 = vcombine.high %v227, %v227
  %v407 = vunpack.c.l.s4 1983009808
  %v408 = vunpack.c.0.s8 %v407
  %v409 = vlaneseq
  %v410 = vshrl.u32 %v409, 7
  %v411 = vsub.s32 %v408, %v410
  %v412 = vrot.slane %v227, %v411
  %v414 = vunpack.c.l.s4 1983009808
  %v415 = vunpack.c.0.s8 %v414
  %v416 = vlaneseq
  %v417 = vshrl.u32 %v416, 7
  %v418 = vsub.s32 %v415, %v417
  %v419 = vrot.slane %v405, %v418
  %v420 = vcombine.high %v412, %v412
  %v421 = vcombine.high %v419, %v419
  %v422 = vcombine.high %v232, %v232
  %v424 = vunpack.c.l.s4 1983009808
  %v425 = vunpack.c.0.s8 %v424
  %v426 = vlaneseq
  %v427 = vshrl.u32 %v426, 7
  %v428 = vsub.s32 %v425, %v427
  %v429 = vrot.slane %v232, %v428
  %v431 = vunpack.c.l.s4 1983009808
  %v432 = vunpack.c.0.s8 %v431
  %v433 = vlaneseq
  %v434 = vshrl.u32 %v433, 7
  %v435 = vsub.s32 %v432, %v434
  %v436 = vrot.slane %v422, %v435
  %v437 = vcombine.high %v429, %v429
  %v438 = vcombine.high %v436, %v436
  %v439 = vcombine.high %v235, %v235
  %v441 = vunpack.c.l.s4 1983009808
  %v442 = vunpack.c.0.s8 %v441
  %v443 = vlaneseq
  %v444 = vshrl.u32 %v443, 7
  %v445 = vsub.s32 %v442, %v444
  %v446 = vrot.slane %v235, %v445
  %v448 = vunpack.c.l.s4 1983009808
  %v449 = vunpack.c.0.s8 %v448
  %v450 = vlaneseq
  %v451 = vshrl.u32 %v450, 7
  %v452 = vsub.s32 %v449, %v451
  %v453 = vrot.slane %v439, %v452
  %v454 = vcombine.high %v446, %v446
  %v455 = vcombine.high %v453, %v453
  %v456 = vcombine.high %v240, %v240
  %v458 = vunpack.c.l.s4 1983009808
  %v459 = vunpack.c.0.s8 %v458
  %v460 = vlaneseq
  %v461 = vshrl.u32 %v460, 7
  %v462 = vsub.s32 %v459, %v461
  %v463 = vrot.slane %v240, %v462
  %v465 = vunpack.c.l.s4 1983009808
  %v466 = vunpack.c.0.s8 %v465
  %v467 = vlaneseq
  %v468 = vshrl.u32 %v467, 7
  %v469 = vsub.s32 %v466, %v468
  %v470 = vrot.slane %v456, %v469
  %v471 = vcombine.high %v463, %v463
  %v472 = vcombine.high %v470, %v470
  %v473 = vcombine.high %v243, %v243
  %v475 = vunpack.c.l.s4 1983009808
  %v476 = vunpack.c.0.s8 %v475
  %v477 = vlaneseq
  %v478 = vshrl.u32 %v477, 7
  %v479 = vsub.s32 %v476, %v478
  %v480 = vrot.slane %v243, %v479
  %v482 = vunpack.c.l.s4 1983009808
  %v483 = vunpack.c.0.s8 %v482
  %v484 = vlaneseq
  %v485 = vshrl.u32 %v484, 7
  %v486 = vsub.s32 %v483, %v485
  %v487 = vrot.slane %v473, %v486
  %v488 = vcombine.high %v480, %v480
  %v489 = vcombine.high %v487, %v487
  %v490 = vcombine.high %v248, %v248
  %v492 = vunpack.c.l.s4 1983009808
  %v493 = vunpack.c.0.s8 %v492
  %v494 = vlaneseq
  %v495 = vshrl.u32 %v494, 7
  %v496 = vsub.s32 %v493, %v495
  %v497 = vrot.slane %v248, %v496
  %v499 = vunpack.c.l.s4 1983009808
  %v500 = vunpack.c.0.s8 %v499
  %v501 = vlaneseq
  %v502 = vshrl.u32 %v501, 7
  %v503 = vsub.s32 %v500, %v502
  %v504 = vrot.slane %v490, %v503
  %v505 = vcombine.high %v497, %v497
  %v506 = vcombine.high %v504, %v504
  %v507 = vcombine.high %v251, %v251
  %v509 = vunpack.c.l.s4 1983009808
  %v510 = vunpack.c.0.s8 %v509
  %v511 = vlaneseq
  %v512 = vshrl.u32 %v511, 7
  %v513 = vsub.s32 %v510, %v512
  %v514 = vrot.slane %v251, %v513
  %v516 = vunpack.c.l.s4 1983009808
  %v517 = vunpack.c.0.s8 %v516
  %v518 = vlaneseq
  %v519 = vshrl.u32 %v518, 7
  %v520 = vsub.s32 %v517, %v519
  %v521 = vrot.slane %v507, %v520
  %v522 = vcombine.high %v514, %v514
  %v523 = vcombine.high %v521, %v521
  %v524 = vcombine.high %v256, %v256
  %v526 = vunpack.c.l.s4 1983009808
  %v527 = vunpack.c.0.s8 %v526
  %v528 = vlaneseq
  %v529 = vshrl.u32 %v528, 7
  %v530 = vsub.s32 %v527, %v529
  %v531 = vrot.slane %v256, %v530
  %v533 = vunpack.c.l.s4 1983009808
  %v534 = vunpack.c.0.s8 %v533
  %v535 = vlaneseq
  %v536 = vshrl.u32 %v535, 7
  %v537 = vsub.s32 %v534, %v536
  %v538 = vrot.slane %v524, %v537
  %v539 = vcombine.high %v531, %v531
  %v540 = vcombine.high %v538, %v538
  %v541 = vcombine.high %v259, %v259
  %v543 = vunpack.c.l.s4 1983009808
  %v544 = vunpack.c.0.s8 %v543
  %v545 = vlaneseq
  %v546 = vshrl.u32 %v545, 7
  %v547 = vsub.s32 %v544, %v546
  %v548 = vrot.slane %v259, %v547
  %v550 = vunpack.c.l.s4 1983009808
  %v551 = vunpack.c.0.s8 %v550
  %v552 = vlaneseq
  %v553 = vshrl.u32 %v552, 7
  %v554 = vsub.s32 %v551, %v553
  %v555 = vrot.slane %v541, %v554
  %v556 = vcombine.high %v548, %v548
  %v557 = vcombine.high %v555, %v555
  %v622 = vrot.slane %v293, 7
  %v623 = vrot.slane %v622, 2
  %v624 = vrot.slane %v301, 7
  %v625 = vrot.slane %v624, 2
  %v626 = vrot.slane %v300, 7
  %v627 = vrot.slane %v626, 2
  %v628 = vrot.slane %v302, 7
  %v629 = vrot.slane %v628, 2
  %v630 = vrot.slane %v310, 7
  %v631 = vrot.slane %v630, 2
  %v632 = vrot.slane %v318, 7
  %v633 = vrot.slane %v632, 2
  %v634 = vrot.slane %v317, 7
  %v635 = vrot.slane %v634, 2
  %v636 = vrot.slane %v319, 7
  %v637 = vrot.slane %v636, 2
  %v638 = vrot.slane %v327, 7
  %v639 = vrot.slane %v638, 2
  %v640 = vrot.slane %v335, 7
  %v641 = vrot.slane %v640, 2
  %v642 = vrot.slane %v334, 7
  %v643 = vrot.slane %v642, 2
  %v644 = vrot.slane %v336, 7
  %v645 = vrot.slane %v644, 2
  %v646 = vrot.slane %v344, 7
  %v647 = vrot.slane %v646, 2
  %v648 = vrot.slane %v352, 7
  %v649 = vrot.slane %v648, 2
  %v650 = vrot.slane %v351, 7
  %v651 = vrot.slane %v650, 2
  %v652 = vrot.slane %v353, 7
  %v653 = vrot.slane %v652, 2
  %v654 = vrot.slane %v361, 7
  %v655 = vrot.slane %v654, 2
  %v656 = vrot.slane %v369, 7
  %v657 = vrot.slane %v656, 2
  %v658 = vrot.slane %v368, 7
  %v659 = vrot.slane %v658, 2
  %v660 = vrot.slane %v370, 7
  %v661 = vrot.slane %v660, 2
  %v662 = vrot.slane %v378, 7
  %v663 = vrot.slane %v662, 2
  %v664 = vrot.slane %v386, 7
  %v665 = vrot.slane %v664, 2
  %v666 = vrot.slane %v385, 7
  %v667 = vrot.slane %v666, 2
  %v668 = vrot.slane %v387, 7
  %v669 = vrot.slane %v668, 2
  %v670 = vrot.slane %v395, 7
  %v671 = vrot.slane %v670, 2
  %v672 = vrot.slane %v403, 7
  %v673 = vrot.slane %v672, 2
  %v674 = vrot.slane %v402, 7
  %v675 = vrot.slane %v674, 2
  %v676 = vrot.slane %v404, 7
  %v677 = vrot.slane %v676, 2
  %v678 = vrot.slane %v412, 7
  %v679 = vrot.slane %v678, 2
  %v680 = vrot.slane %v420, 7
  %v681 = vrot.slane %v680, 2
  %v682 = vrot.slane %v419, 7
  %v683 = vrot.slane %v682, 2
  %v684 = vrot.slane %v421, 7
  %v685 = vrot.slane %v684, 2
  %v686 = vrot.slane %v429, 7
  %v687 = vrot.slane %v686, 2
  %v688 = vrot.slane %v437, 7
  %v689 = vrot.slane %v688, 2
  %v690 = vrot.slane %v436, 7
  %v691 = vrot.slane %v690, 2
  %v692 = vrot.slane %v438, 7
  %v693 = vrot.slane %v692, 2
  %v694 = vrot.slane %v446, 7
  %v695 = vrot.slane %v694, 2
  %v696 = vrot.slane %v454, 7
  %v697 = vrot.slane %v696, 2
  %v698 = vrot.slane %v453, 7
  %v699 = vrot.slane %v698, 2
  %v700 = vrot.slane %v455, 7
  %v701 = vrot.slane %v700, 2
  %v702 = vrot.slane %v463, 7
  %v703 = vrot.slane %v702, 2
  %v704 = vrot.slane %v471, 7
  %v705 = vrot.slane %v704, 2
  %v706 = vrot.slane %v470, 7
  %v707 = vrot.slane %v706, 2
  %v708 = vrot.slane %v472, 7
  %v709 = vrot.slane %v708, 2
  %v710 = vrot.slane %v480, 7
  %v711 = vrot.slane %v710, 2
  %v712 = vrot.slane %v488, 7
  %v713 = vrot.slane %v712, 2
  %v714 = vrot.slane %v487, 7
  %v715 = vrot.slane %v714, 2
  %v716 = vrot.slane %v489, 7
  %v717 = vrot.slane %v716, 2
  %v718 = vrot.slane %v497, 7
  %v719 = vrot.slane %v718, 2
  %v720 = vrot.slane %v505, 7
  %v721 = vrot.slane %v720, 2
  %v722 = vrot.slane %v504, 7
  %v723 = vrot.slane %v722, 2
  %v724 = vrot.slane %v506, 7
  %v725 = vrot.slane %v724, 2
  %v726 = vrot.slane %v514, 7
  %v727 = vrot.slane %v726, 2
  %v728 = vrot.slane %v522, 7
  %v729 = vrot.slane %v728, 2
  %v730 = vrot.slane %v521, 7
  %v731 = vrot.slane %v730, 2
  %v732 = vrot.slane %v523, 7
  %v733 = vrot.slane %v732, 2
  %v734 = vrot.slane %v531, 7
  %v735 = vrot.slane %v734, 2
  %v736 = vrot.slane %v539, 7
  %v737 = vrot.slane %v736, 2
  %v738 = vrot.slane %v538, 7
  %v739 = vrot.slane %v738, 2
  %v740 = vrot.slane %v540, 7
  %v741 = vrot.slane %v740, 2
  %v742 = vrot.slane %v548, 7
  %v743 = vrot.slane %v742, 2
  %v744 = vrot.slane %v556, 7
  %v745 = vrot.slane %v744, 2
  %v746 = vrot.slane %v555, 7
  %v747 = vrot.slane %v746, 2
  %v748 = vrot.slane %v557, 7
  %v749 = vrot.slane %v748, 2
  %v814 = vmax.f32 %v293, %v623
  %v815 = vmax.f32 %v301, %v625
  %v816 = vmax.f32 %v300, %v627
  %v817 = vmax.f32 %v302, %v629
  %v818 = vmax.f32 %v310, %v631
  %v819 = vmax.f32 %v318, %v633
  %v820 = vmax.f32 %v317, %v635
  %v821 = vmax.f32 %v319, %v637
  %v822 = vmax.f32 %v327, %v639
  %v823 = vmax.f32 %v335, %v641
  %v824 = vmax.f32 %v334, %v643
  %v825 = vmax.f32 %v336, %v645
  %v826 = vmax.f32 %v344, %v647
  %v827 = vmax.f32 %v352, %v649
  %v828 = vmax.f32 %v351, %v651
  %v829 = vmax.f32 %v353, %v653
  %v830 = vmax.f32 %v361, %v655
  %v831 = vmax.f32 %v369, %v657
  %v832 = vmax.f32 %v368, %v659
  %v833 = vmax.f32 %v370, %v661
  %v834 = vmax.f32 %v378, %v663
  %v835 = vmax.f32 %v386, %v665
  %v836 = vmax.f32 %v385, %v667
  %v837 = vmax.f32 %v387, %v669
  %v838 = vmax.f32 %v395, %v671
  %v839 = vmax.f32 %v403, %v673
  %v840 = vmax.f32 %v402, %v675
  %v841 = vmax.f32 %v404, %v677
  %v842 = vmax.f32 %v412, %v679
  %v843 = vmax.f32 %v420, %v681
  %v844 = vmax.f32 %v419, %v683
  %v845 = vmax.f32 %v421, %v685
  %v846 = vmax.f32 %v429, %v687
  %v847 = vmax.f32 %v437, %v689
  %v848 = vmax.f32 %v436, %v691
  %v849 = vmax.f32 %v438, %v693
  %v850 = vmax.f32 %v446, %v695
  %v851 = vmax.f32 %v454, %v697
  %v852 = vmax.f32 %v453, %v699
  %v853 = vmax.f32 %v455, %v701
  %v854 = vmax.f32 %v463, %v703
  %v855 = vmax.f32 %v471, %v705
  %v856 = vmax.f32 %v470, %v707
  %v857 = vmax.f32 %v472, %v709
  %v858 = vmax.f32 %v480, %v711
  %v859 = vmax.f32 %v488, %v713
  %v860 = vmax.f32 %v487, %v715
  %v861 = vmax.f32 %v489, %v717
  %v862 = vmax.f32 %v497, %v719
  %v863 = vmax.f32 %v505, %v721
  %v864 = vmax.f32 %v504, %v723
  %v865 = vmax.f32 %v506, %v725
  %v866 = vmax.f32 %v514, %v727
  %v867 = vmax.f32 %v522, %v729
  %v868 = vmax.f32 %v521, %v731
  %v869 = vmax.f32 %v523, %v733
  %v870 = vmax.f32 %v531, %v735
  %v871 = vmax.f32 %v539, %v737
  %v872 = vmax.f32 %v538, %v739
  %v873 = vmax.f32 %v540, %v741
  %v874 = vmax.f32 %v548, %v743
  %v875 = vmax.f32 %v556, %v745
  %v876 = vmax.f32 %v555, %v747
  %v877 = vmax.f32 %v557, %v749
  %v878 = vmax.f32 %v814, %v818
  %v879 = vmax.f32 %v815, %v819
  %v880 = vmax.f32 %v816, %v820
  %v881 = vmax.f32 %v817, %v821
  %v882 = vmax.f32 %v822, %v826
  %v883 = vmax.f32 %v823, %v827
  %v884 = vmax.f32 %v824, %v828
  %v885 = vmax.f32 %v825, %v829
  %v886 = vmax.f32 %v830, %v834
  %v887 = vmax.f32 %v831, %v835
  %v888 = vmax.f32 %v832, %v836
  %v889 = vmax.f32 %v833, %v837
  %v890 = vmax.f32 %v838, %v842
  %v891 = vmax.f32 %v839, %v843
  %v892 = vmax.f32 %v840, %v844
  %v893 = vmax.f32 %v841, %v845
  %v894 = vmax.f32 %v846, %v850
  %v895 = vmax.f32 %v847, %v851
  %v896 = vmax.f32 %v848, %v852
  %v897 = vmax.f32 %v849, %v853
  %v898 = vmax.f32 %v854, %v858
  %v899 = vmax.f32 %v855, %v859
  %v900 = vmax.f32 %v856, %v860
  %v901 = vmax.f32 %v857, %v861
  %v902 = vmax.f32 %v862, %v866
  %v903 = vmax.f32 %v863, %v867
  %v904 = vmax.f32 %v864, %v868
  %v905 = vmax.f32 %v865, %v869
  %v906 = vmax.f32 %v870, %v874
  %v907 = vmax.f32 %v871, %v875
  %v908 = vmax.f32 %v872, %v876
  %v909 = vmax.f32 %v873, %v877
  %v910 = vpack.c.bf16 %v878, %v878
  %v911 = vpack.c.bf16 %v879, %v879
  %v912 = vpack.c.bf16 %v880, %v880
  %v913 = vpack.c.bf16 %v881, %v881
  %v914 = vpack.c.bf16 %v882, %v882
  %v915 = vpack.c.bf16 %v883, %v883
  %v916 = vpack.c.bf16 %v884, %v884
  %v917 = vpack.c.bf16 %v885, %v885
  %v918 = vpack.c.bf16 %v886, %v886
  %v919 = vpack.c.bf16 %v887, %v887
  %v920 = vpack.c.bf16 %v888, %v888
  %v921 = vpack.c.bf16 %v889, %v889
  %v922 = vpack.c.bf16 %v890, %v890
  %v923 = vpack.c.bf16 %v891, %v891
  %v924 = vpack.c.bf16 %v892, %v892
  %v925 = vpack.c.bf16 %v893, %v893
  %v926 = vpack.c.bf16 %v894, %v894
  %v927 = vpack.c.bf16 %v895, %v895
  %v928 = vpack.c.bf16 %v896, %v896
  %v929 = vpack.c.bf16 %v897, %v897
  %v930 = vpack.c.bf16 %v898, %v898
  %v931 = vpack.c.bf16 %v899, %v899
  %v932 = vpack.c.bf16 %v900, %v900
  %v933 = vpack.c.bf16 %v901, %v901
  %v934 = vpack.c.bf16 %v902, %v902
  %v935 = vpack.c.bf16 %v903, %v903
  %v936 = vpack.c.bf16 %v904, %v904
  %v937 = vpack.c.bf16 %v905, %v905
  %v938 = vpack.c.bf16 %v906, %v906
  %v939 = vpack.c.bf16 %v907, %v907
  %v940 = vpack.c.bf16 %v908, %v908
  %v941 = vpack.c.bf16 %v909, %v909
  %v958 = vunpack.c.l.b16 %v910
  %v959 = vunpack.c.l.b16 %v911
  %v960 = vunpack.c.l.b16 %v912
  %v961 = vunpack.c.l.b16 %v913
  %v962 = vunpack.c.l.b16 %v914
  %v963 = vunpack.c.l.b16 %v915
  %v964 = vunpack.c.l.b16 %v916
  %v965 = vunpack.c.l.b16 %v917
  %v966 = vunpack.c.l.b16 %v918
  %v967 = vunpack.c.l.b16 %v919
  %v968 = vunpack.c.l.b16 %v920
  %v969 = vunpack.c.l.b16 %v921
  %v970 = vunpack.c.l.b16 %v922
  %v971 = vunpack.c.l.b16 %v923
  %v972 = vunpack.c.l.b16 %v924
  %v973 = vunpack.c.l.b16 %v925
  %v974 = vrot.slane %v959, 7
  %vm975 = vcmask 1041409
  %v976 = vsel %vm975, %v974, %v958
  %v977 = vrot.slane %v960, 6
  %vm978 = vcmask 1042434
  %v979 = vsel %vm978, %v977, %v976
  %v980 = vrot.slane %v961, 5
  %vm981 = vcmask 1043459
  %v982 = vsel %vm981, %v980, %v979
  %v983 = vrot.slane %v962, 4
  %vm984 = vcmask 1044484
  %v985 = vsel %vm984, %v983, %v982
  %v986 = vrot.slane %v963, 3
  %vm987 = vcmask 1045509
  %v988 = vsel %vm987, %v986, %v985
  %v989 = vrot.slane %v964, 2
  %vm990 = vcmask 1046534
  %v991 = vsel %vm990, %v989, %v988
  %v992 = vrot.slane %v965, 1
  %vm993 = vcmask 1047559
  %v994 = vsel %vm993, %v992, %v991
  %v995 = vrot.slane %v967, 7
  %v996 = vsel %vm975, %v995, %v966
  %v997 = vrot.slane %v968, 6
  %v998 = vsel %vm978, %v997, %v996
  %v999 = vrot.slane %v969, 5
  %v1000 = vsel %vm981, %v999, %v998
  %v1001 = vrot.slane %v970, 4
  %v1002 = vsel %vm984, %v1001, %v1000
  %v1003 = vrot.slane %v971, 3
  %v1004 = vsel %vm987, %v1003, %v1002
  %v1005 = vrot.slane %v972, 2
  %v1006 = vsel %vm990, %v1005, %v1004
  %v1007 = vrot.slane %v973, 1
  %v1008 = vsel %vm993, %v1007, %v1006
  %v1009 = vpack.c.b16 %v1008, %v994
  %1010 = vrot.lane.b32.xlu0 %v1009, 120
  %v1011 = vpop.permute.xlu0 %1010
  %vm1012 = vcmask 64512
  %v1014 = vsel %vm1012, %v262, 0
  %v1017 = vsel %vm1012, %v263, 0
  %v1020 = vsel %vm1012, %v264, 0
  %v1023 = vsel %vm1012, %v265, 0
  %v1026 = vsel %vm1012, %v1011, 0
  %1028 = vmatprep.subr.bf16.mxu0 0
  %1029 = vmatpush1.bf16.xpose.msra.mxu0 %v1026
  %1030 = vmatprep.subr.bf16.mxu0 0
  %1031 = vmatpush1.bf16.xpose.msra.mxu0 0
  %1032 = vmatprep.subr.bf16.mxu0 0
  %1033 = vmatpush1.bf16.xpose.msra.mxu0 0
  %1034 = vmatprep.subr.bf16.mxu0 0
  %1035 = vmatpush1.bf16.xpose.msra.mxu0 0
  %1036 = vmatprep.subr.bf16.mxu0 0
  %1037 = vmatpush1.bf16.xpose.msra.mxu0 0
  %1038 = vmatprep.subr.bf16.mxu0 0
  %1039 = vmatpush1.bf16.xpose.msra.mxu0 0
  %1040 = vmatprep.subr.bf16.mxu0 0
  %1041 = vmatpush1.bf16.xpose.msra.mxu0 0
  %1042 = vmatprep.subr.bf16.mxu0 0
  %1043 = vmatpush1.bf16.xpose.msra.mxu0 0
  %1044 = vmatprep.subr.bf16.mxu0 0
  %1045 = vmatpush1.bf16.xpose.msra.mxu0 0
  %1046 = vmatprep.subr.bf16.mxu0 0
  %1047 = vmatpush1.bf16.xpose.msra.mxu0 0
  %1048 = vmatprep.subr.bf16.mxu0 0
  %1049 = vmatpush1.bf16.xpose.msra.mxu0 0
  %1050 = vmatprep.subr.bf16.mxu0 0
  %1051 = vmatpush1.bf16.xpose.msra.mxu0 0
  %1052 = vmatprep.subr.bf16.mxu0 0
  %1053 = vmatpush1.bf16.xpose.msra.mxu0 0
  %1054 = vmatprep.subr.bf16.mxu0 0
  %1055 = vmatpush1.bf16.xpose.msra.mxu0 0
  %1056 = vmatprep.subr.bf16.mxu0 0
  %1057 = vmatpush1.bf16.xpose.msra.mxu0 0
  %1058 = vmatprep.subr.bf16.mxu0 0
  %1059 = vmatpush1.bf16.xpose.msra.mxu0 0
  %1060 = vmatprep.mubr.bf16.mxu0 0
  %1061 = vmatmul.mubr.bf16.gmra.mrb[0].mxu0 %v1014
  %v1062 = vpop.f32.mrb[0].mxu0
  %v1063 = vadd.f32 0.0, %v1062
  %v1064 = vpop.f32.mrb[0].mxu0
  %v1065 = vpop.f32.mrb[0].mxu0
  %v1066 = vadd.f32 0.0, %v1065
  %v1067 = vpop.f32.mrb[0].mxu0
  %1068 = vmatprep.mubr.bf16.mxu0 0
  %1069 = vmatmul.mubr.bf16.gmra.mrb[0].mxu0 %v1017
  %v1070 = vpop.f32.mrb[0].mxu0
  %v1071 = vadd.f32 0.0, %v1070
  %v1072 = vpop.f32.mrb[0].mxu0
  %v1073 = vpop.f32.mrb[0].mxu0
  %v1074 = vadd.f32 0.0, %v1073
  %v1075 = vpop.f32.mrb[0].mxu0
  %1076 = vmatprep.mubr.bf16.mxu0 0
  %1077 = vmatmul.mubr.bf16.gmra.mrb[0].mxu0 %v1020
  %v1078 = vpop.f32.mrb[0].mxu0
  %v1079 = vadd.f32 0.0, %v1078
  %v1080 = vpop.f32.mrb[0].mxu0
  %v1081 = vpop.f32.mrb[0].mxu0
  %v1082 = vadd.f32 0.0, %v1081
  %v1083 = vpop.f32.mrb[0].mxu0
  %1084 = vmatprep.mubr.bf16.mxu0 0
  %1085 = vmatmul.mubr.bf16.gmra.mrb[0].mxu0 %v1023
  %v1086 = vpop.f32.mrb[0].mxu0
  %v1087 = vadd.f32 0.0, %v1086
  %v1088 = vpop.f32.mrb[0].mxu0
  %v1089 = vpop.f32.mrb[0].mxu0
  %v1090 = vadd.f32 0.0, %v1089
  %v1091 = vpop.f32.mrb[0].mxu0
  %1092 = vdwg.mxu0
  %v1109 = vunpack.c.l.b16 %v926
  %v1110 = vunpack.c.l.b16 %v927
  %v1111 = vunpack.c.l.b16 %v928
  %v1112 = vunpack.c.l.b16 %v929
  %v1113 = vunpack.c.l.b16 %v930
  %v1114 = vunpack.c.l.b16 %v931
  %v1115 = vunpack.c.l.b16 %v932
  %v1116 = vunpack.c.l.b16 %v933
  %v1117 = vunpack.c.l.b16 %v934
  %v1118 = vunpack.c.l.b16 %v935
  %v1119 = vunpack.c.l.b16 %v936
  %v1120 = vunpack.c.l.b16 %v937
  %v1121 = vunpack.c.l.b16 %v938
  %v1122 = vunpack.c.l.b16 %v939
  %v1123 = vunpack.c.l.b16 %v940
  %v1124 = vunpack.c.l.b16 %v941
  %v1125 = vrot.slane %v1110, 7
  %v1126 = vsel %vm975, %v1125, %v1109
  %v1127 = vrot.slane %v1111, 6
  %v1128 = vsel %vm978, %v1127, %v1126
  %v1129 = vrot.slane %v1112, 5
  %v1130 = vsel %vm981, %v1129, %v1128
  %v1131 = vrot.slane %v1113, 4
  %v1132 = vsel %vm984, %v1131, %v1130
  %v1133 = vrot.slane %v1114, 3
  %v1134 = vsel %vm987, %v1133, %v1132
  %v1135 = vrot.slane %v1115, 2
  %v1136 = vsel %vm990, %v1135, %v1134
  %v1137 = vrot.slane %v1116, 1
  %v1138 = vsel %vm993, %v1137, %v1136
  %v1139 = vrot.slane %v1118, 7
  %v1140 = vsel %vm975, %v1139, %v1117
  %v1141 = vrot.slane %v1119, 6
  %v1142 = vsel %vm978, %v1141, %v1140
  %v1143 = vrot.slane %v1120, 5
  %v1144 = vsel %vm981, %v1143, %v1142
  %v1145 = vrot.slane %v1121, 4
  %v1146 = vsel %vm984, %v1145, %v1144
  %v1147 = vrot.slane %v1122, 3
  %v1148 = vsel %vm987, %v1147, %v1146
  %v1149 = vrot.slane %v1123, 2
  %v1150 = vsel %vm990, %v1149, %v1148
  %v1151 = vrot.slane %v1124, 1
  %v1152 = vsel %vm993, %v1151, %v1150
  %v1153 = vpack.c.b16 %v1152, %v1138
  %1154 = vrot.lane.b32.xlu0 %v1153, 120
  %v1155 = vpop.permute.xlu0 %1154
  %v1157 = vsel %vm1012, %v266, 0
  %v1160 = vsel %vm1012, %v267, 0
  %v1163 = vsel %vm1012, %v268, 0
  %v1166 = vsel %vm1012, %v269, 0
  %v1169 = vsel %vm1012, %v1155, 0
  %1171 = vmatprep.subr.bf16.mxu0 0
  %1172 = vmatpush1.bf16.xpose.msra.mxu0 %v1169
  %1173 = vmatprep.subr.bf16.mxu0 0
  %1174 = vmatpush1.bf16.xpose.msra.mxu0 0
  %1175 = vmatprep.subr.bf16.mxu0 0
  %1176 = vmatpush1.bf16.xpose.msra.mxu0 0
  %1177 = vmatprep.subr.bf16.mxu0 0
  %1178 = vmatpush1.bf16.xpose.msra.mxu0 0
  %1179 = vmatprep.subr.bf16.mxu0 0
  %1180 = vmatpush1.bf16.xpose.msra.mxu0 0
  %1181 = vmatprep.subr.bf16.mxu0 0
  %1182 = vmatpush1.bf16.xpose.msra.mxu0 0
  %1183 = vmatprep.subr.bf16.mxu0 0
  %1184 = vmatpush1.bf16.xpose.msra.mxu0 0
  %1185 = vmatprep.subr.bf16.mxu0 0
  %1186 = vmatpush1.bf16.xpose.msra.mxu0 0
  %1187 = vmatprep.subr.bf16.mxu0 0
  %1188 = vmatpush1.bf16.xpose.msra.mxu0 0
  %1189 = vmatprep.subr.bf16.mxu0 0
  %1190 = vmatpush1.bf16.xpose.msra.mxu0 0
  %1191 = vmatprep.subr.bf16.mxu0 0
  %1192 = vmatpush1.bf16.xpose.msra.mxu0 0
  %1193 = vmatprep.subr.bf16.mxu0 0
  %1194 = vmatpush1.bf16.xpose.msra.mxu0 0
  %1195 = vmatprep.subr.bf16.mxu0 0
  %1196 = vmatpush1.bf16.xpose.msra.mxu0 0
  %1197 = vmatprep.subr.bf16.mxu0 0
  %1198 = vmatpush1.bf16.xpose.msra.mxu0 0
  %1199 = vmatprep.subr.bf16.mxu0 0
  %1200 = vmatpush1.bf16.xpose.msra.mxu0 0
  %1201 = vmatprep.subr.bf16.mxu0 0
  %1202 = vmatpush1.bf16.xpose.msra.mxu0 0
  %1203 = vmatprep.mubr.bf16.mxu0 0
  %1204 = vmatmul.mubr.bf16.gmra.mrb[0].mxu0 %v1157
  %v1205 = vpop.f32.mrb[0].mxu0
  %v1206 = vadd.f32 0.0, %v1205
  %v1207 = vpop.f32.mrb[0].mxu0
  %v1208 = vpop.f32.mrb[0].mxu0
  %v1209 = vadd.f32 0.0, %v1208
  %v1210 = vpop.f32.mrb[0].mxu0
  %1211 = vmatprep.mubr.bf16.mxu0 0
  %1212 = vmatmul.mubr.bf16.gmra.mrb[0].mxu0 %v1160
  %v1213 = vpop.f32.mrb[0].mxu0
  %v1214 = vadd.f32 0.0, %v1213
  %v1215 = vpop.f32.mrb[0].mxu0
  %v1216 = vpop.f32.mrb[0].mxu0
  %v1217 = vadd.f32 0.0, %v1216
  %v1218 = vpop.f32.mrb[0].mxu0
  %1219 = vmatprep.mubr.bf16.mxu0 0
  %1220 = vmatmul.mubr.bf16.gmra.mrb[0].mxu0 %v1163
  %v1221 = vpop.f32.mrb[0].mxu0
  %v1222 = vadd.f32 0.0, %v1221
  %v1223 = vpop.f32.mrb[0].mxu0
  %v1224 = vpop.f32.mrb[0].mxu0
  %v1225 = vadd.f32 0.0, %v1224
  %v1226 = vpop.f32.mrb[0].mxu0
  %1227 = vmatprep.mubr.bf16.mxu0 0
  %1228 = vmatmul.mubr.bf16.gmra.mrb[0].mxu0 %v1166
  %v1229 = vpop.f32.mrb[0].mxu0
  %v1230 = vadd.f32 0.0, %v1229
  %v1231 = vpop.f32.mrb[0].mxu0
  %v1232 = vpop.f32.mrb[0].mxu0
  %v1233 = vadd.f32 0.0, %v1232
  %v1234 = vpop.f32.mrb[0].mxu0
  %1235 = vdwg.mxu0
  %vm1236 = vcmask 130048
  %v1237 = vsel %vm1236, %v1063, -inf
  %1238 = vmax.xlane.f32.xlu0 %v1237
  %v1239 = vpop.xlane.xlu0 %1238
  %v1240 = vsel %vm1236, %v1066, -inf
  %1241 = vmax.xlane.f32.xlu0 %v1240
  %v1242 = vpop.xlane.xlu0 %1241
  %v1243 = vsel %vm1236, %v1071, -inf
  %1244 = vmax.xlane.f32.xlu0 %v1243
  %v1245 = vpop.xlane.xlu0 %1244
  %v1246 = vsel %vm1236, %v1074, -inf
  %1247 = vmax.xlane.f32.xlu0 %v1246
  %v1248 = vpop.xlane.xlu0 %1247
  %v1249 = vsel %vm1236, %v1079, -inf
  %1250 = vmax.xlane.f32.xlu0 %v1249
  %v1251 = vpop.xlane.xlu0 %1250
  %v1252 = vsel %vm1236, %v1082, -inf
  %1253 = vmax.xlane.f32.xlu0 %v1252
  %v1254 = vpop.xlane.xlu0 %1253
  %v1255 = vsel %vm1236, %v1087, -inf
  %1256 = vmax.xlane.f32.xlu0 %v1255
  %v1257 = vpop.xlane.xlu0 %1256
  %v1258 = vsel %vm1236, %v1090, -inf
  %1259 = vmax.xlane.f32.xlu0 %v1258
  %v1260 = vpop.xlane.xlu0 %1259
  %v1261 = vsel %vm1236, %v1206, -inf
  %1262 = vmax.xlane.f32.xlu0 %v1261
  %v1263 = vpop.xlane.xlu0 %1262
  %v1264 = vsel %vm1236, %v1209, -inf
  %1265 = vmax.xlane.f32.xlu0 %v1264
  %v1266 = vpop.xlane.xlu0 %1265
  %v1267 = vsel %vm1236, %v1214, -inf
  %1268 = vmax.xlane.f32.xlu0 %v1267
  %v1269 = vpop.xlane.xlu0 %1268
  %v1270 = vsel %vm1236, %v1217, -inf
  %1271 = vmax.xlane.f32.xlu0 %v1270
  %v1272 = vpop.xlane.xlu0 %1271
  %v1273 = vsel %vm1236, %v1222, -inf
  %1274 = vmax.xlane.f32.xlu0 %v1273
  %v1275 = vpop.xlane.xlu0 %1274
  %v1276 = vsel %vm1236, %v1225, -inf
  %1277 = vmax.xlane.f32.xlu0 %v1276
  %v1278 = vpop.xlane.xlu0 %1277
  %v1279 = vsel %vm1236, %v1230, -inf
  %1280 = vmax.xlane.f32.xlu0 %v1279
  %v1281 = vpop.xlane.xlu0 %1280
  %v1282 = vsel %vm1236, %v1233, -inf
  %1283 = vmax.xlane.f32.xlu0 %v1282
  %v1284 = vpop.xlane.xlu0 %1283
  %v1285 = vsub.f32 %v1063, %v1239
  %v1286 = vsub.f32 %v1066, %v1242
  %v1287 = vsub.f32 %v1071, %v1245
  %v1288 = vsub.f32 %v1074, %v1248
  %v1289 = vsub.f32 %v1079, %v1251
  %v1290 = vsub.f32 %v1082, %v1254
  %v1291 = vsub.f32 %v1087, %v1257
  %v1292 = vsub.f32 %v1090, %v1260
  %v1293 = vsub.f32 %v1206, %v1263
  %v1294 = vsub.f32 %v1209, %v1266
  %v1295 = vsub.f32 %v1214, %v1269
  %v1296 = vsub.f32 %v1217, %v1272
  %v1297 = vsub.f32 %v1222, %v1275
  %v1298 = vsub.f32 %v1225, %v1278
  %v1299 = vsub.f32 %v1230, %v1281
  %v1300 = vsub.f32 %v1233, %v1284
  %v1301 = vmul.f32 %v1285, 1.442695
  %v1302 = vpow.pop %v1301
  %v1303 = vmul.f32 %v1286, 1.442695
  %v1304 = vpow.pop %v1303
  %v1305 = vmul.f32 %v1287, 1.442695
  %v1306 = vpow.pop %v1305
  %v1307 = vmul.f32 %v1288, 1.442695
  %v1308 = vpow.pop %v1307
  %v1309 = vmul.f32 %v1289, 1.442695
  %v1310 = vpow.pop %v1309
  %v1311 = vmul.f32 %v1290, 1.442695
  %v1312 = vpow.pop %v1311
  %v1313 = vmul.f32 %v1291, 1.442695
  %v1314 = vpow.pop %v1313
  %v1315 = vmul.f32 %v1292, 1.442695
  %v1316 = vpow.pop %v1315
  %v1317 = vmul.f32 %v1293, 1.442695
  %v1318 = vpow.pop %v1317
  %v1319 = vmul.f32 %v1294, 1.442695
  %v1320 = vpow.pop %v1319
  %v1321 = vmul.f32 %v1295, 1.442695
  %v1322 = vpow.pop %v1321
  %v1323 = vmul.f32 %v1296, 1.442695
  %v1324 = vpow.pop %v1323
  %v1325 = vmul.f32 %v1297, 1.442695
  %v1326 = vpow.pop %v1325
  %v1327 = vmul.f32 %v1298, 1.442695
  %v1328 = vpow.pop %v1327
  %v1329 = vmul.f32 %v1299, 1.442695
  %v1330 = vpow.pop %v1329
  %v1331 = vmul.f32 %v1300, 1.442695
  %v1332 = vpow.pop %v1331
  %v1333 = vsel %vm1236, %v1302, 0.0
  %1334 = vadd.xlane.f32.xlu0 %v1333
  %v1335 = vpop.xlane.xlu0 %1334
  %v1336 = vsel %vm1236, %v1304, 0.0
  %1337 = vadd.xlane.f32.xlu0 %v1336
  %v1338 = vpop.xlane.xlu0 %1337
  %v1339 = vsel %vm1236, %v1306, 0.0
  %1340 = vadd.xlane.f32.xlu0 %v1339
  %v1341 = vpop.xlane.xlu0 %1340
  %v1342 = vsel %vm1236, %v1308, 0.0
  %1343 = vadd.xlane.f32.xlu0 %v1342
  %v1344 = vpop.xlane.xlu0 %1343
  %v1345 = vsel %vm1236, %v1310, 0.0
  %1346 = vadd.xlane.f32.xlu0 %v1345
  %v1347 = vpop.xlane.xlu0 %1346
  %v1348 = vsel %vm1236, %v1312, 0.0
  %1349 = vadd.xlane.f32.xlu0 %v1348
  %v1350 = vpop.xlane.xlu0 %1349
  %v1351 = vsel %vm1236, %v1314, 0.0
  %1352 = vadd.xlane.f32.xlu0 %v1351
  %v1353 = vpop.xlane.xlu0 %1352
  %v1354 = vsel %vm1236, %v1316, 0.0
  %1355 = vadd.xlane.f32.xlu0 %v1354
  %v1356 = vpop.xlane.xlu0 %1355
  %v1357 = vsel %vm1236, %v1318, 0.0
  %1358 = vadd.xlane.f32.xlu0 %v1357
  %v1359 = vpop.xlane.xlu0 %1358
  %v1360 = vsel %vm1236, %v1320, 0.0
  %1361 = vadd.xlane.f32.xlu0 %v1360
  %v1362 = vpop.xlane.xlu0 %1361
  %v1363 = vsel %vm1236, %v1322, 0.0
  %1364 = vadd.xlane.f32.xlu0 %v1363
  %v1365 = vpop.xlane.xlu0 %1364
  %v1366 = vsel %vm1236, %v1324, 0.0
  %1367 = vadd.xlane.f32.xlu0 %v1366
  %v1368 = vpop.xlane.xlu0 %1367
  %v1369 = vsel %vm1236, %v1326, 0.0
  %1370 = vadd.xlane.f32.xlu0 %v1369
  %v1371 = vpop.xlane.xlu0 %1370
  %v1372 = vsel %vm1236, %v1328, 0.0
  %1373 = vadd.xlane.f32.xlu0 %v1372
  %v1374 = vpop.xlane.xlu0 %1373
  %v1375 = vsel %vm1236, %v1330, 0.0
  %1376 = vadd.xlane.f32.xlu0 %v1375
  %v1377 = vpop.xlane.xlu0 %1376
  %v1378 = vsel %vm1236, %v1332, 0.0
  %1379 = vadd.xlane.f32.xlu0 %v1378
  %v1380 = vpop.xlane.xlu0 %1379
  %s1381 = sld [smem:[#allocation2]]
  %v1382 = vrcp.pop %v1335
  %v1383 = vrcp.pop %v1338
  %v1384 = vrcp.pop %v1341
  %v1385 = vrcp.pop %v1344
  %v1386 = vrcp.pop %v1347
  %v1387 = vrcp.pop %v1350
  %v1388 = vrcp.pop %v1353
  %v1389 = vrcp.pop %v1356
  %v1390 = vrcp.pop %v1359
  %v1391 = vrcp.pop %v1362
  %v1392 = vrcp.pop %v1365
  %v1393 = vrcp.pop %v1368
  %v1394 = vrcp.pop %v1371
  %v1395 = vrcp.pop %v1374
  %v1396 = vrcp.pop %v1377
  %v1397 = vrcp.pop %v1380
  %v1398 = vstv %s1381
  %v1399 = vmul.f32 %v1398, %v1382
  %v1400 = vmul.f32 %v1398, %v1383
  %v1401 = vmul.f32 %v1398, %v1384
  %v1402 = vmul.f32 %v1398, %v1385
  %v1403 = vmul.f32 %v1398, %v1386
  %v1404 = vmul.f32 %v1398, %v1387
  %v1405 = vmul.f32 %v1398, %v1388
  %v1406 = vmul.f32 %v1398, %v1389
  %v1407 = vmul.f32 %v1398, %v1390
  %v1408 = vmul.f32 %v1398, %v1391
  %v1409 = vmul.f32 %v1398, %v1392
  %v1410 = vmul.f32 %v1398, %v1393
  %v1411 = vmul.f32 %v1398, %v1394
  %v1412 = vmul.f32 %v1398, %v1395
  %v1413 = vmul.f32 %v1398, %v1396
  %v1414 = vmul.f32 %v1398, %v1397
  %v1415 = vpack.c.bf16 %v1304, %v1302
  %v1416 = vpack.c.bf16 %v1308, %v1306
  %v1417 = vpack.c.bf16 %v1312, %v1310
  %v1418 = vpack.c.bf16 %v1316, %v1314
  %v1419 = vpack.c.bf16 %v1320, %v1318
  %v1420 = vpack.c.bf16 %v1324, %v1322
  %v1421 = vpack.c.bf16 %v1328, %v1326
  %v1422 = vpack.c.bf16 %v1332, %v1330
  %1423 = vrot.lane.b32.xlu0 %v1009, 112
  %v1424 = vpop.permute.xlu0 %1423
  %v1427 = vsel %vm1236, %v1415, 0
  %v1430 = vsel %vm1236, %v1416, 0
  %v1433 = vsel %vm1236, %v1417, 0
  %v1436 = vsel %vm1236, %v1418, 0
  %1438 = vmatprep.subr.bf16.mxu0 0
  %1439 = vmatpush1.bf16.msra.mxu0 %v1424
  %1440 = vmatprep.subr.bf16.mxu0 0
  %1441 = vmatpush1.bf16.msra.mxu0 0
  %1442 = vmatprep.subr.bf16.mxu0 0
  %1443 = vmatpush1.bf16.msra.mxu0 0
  %1444 = vmatprep.subr.bf16.mxu0 0
  %1445 = vmatpush1.bf16.msra.mxu0 0
  %1446 = vmatprep.subr.bf16.mxu0 0
  %1447 = vmatpush1.bf16.msra.mxu0 0
  %1448 = vmatprep.subr.bf16.mxu0 0
  %1449 = vmatpush1.bf16.msra.mxu0 0
  %1450 = vmatprep.subr.bf16.mxu0 0
  %1451 = vmatpush1.bf16.msra.mxu0 0
  %1452 = vmatprep.subr.bf16.mxu0 0
  %1453 = vmatpush1.bf16.msra.mxu0 0
  %1454 = vmatprep.subr.bf16.mxu0 0
  %1455 = vmatpush1.bf16.msra.mxu0 0
  %1456 = vmatprep.subr.bf16.mxu0 0
  %1457 = vmatpush1.bf16.msra.mxu0 0
  %1458 = vmatprep.subr.bf16.mxu0 0
  %1459 = vmatpush1.bf16.msra.mxu0 0
  %1460 = vmatprep.subr.bf16.mxu0 0
  %1461 = vmatpush1.bf16.msra.mxu0 0
  %1462 = vmatprep.subr.bf16.mxu0 0
  %1463 = vmatpush1.bf16.msra.mxu0 0
  %1464 = vmatprep.subr.bf16.mxu0 0
  %1465 = vmatpush1.bf16.msra.mxu0 0
  %1466 = vmatprep.subr.bf16.mxu0 0
  %1467 = vmatpush1.bf16.msra.mxu0 0
  %1468 = vmatprep.subr.bf16.mxu0 0
  %1469 = vmatpush1.bf16.msra.mxu0 0
  %1470 = vmatprep.mubr.bf16.mxu0 0
  %1471 = vmatmul.mubr.bf16.gmra.mrb[0].mxu0 %v1427
  %v1472 = vpop.f32.mrb[0].mxu0
  %v1473 = vadd.f32 0.0, %v1472
  %v1474 = vpop.f32.mrb[0].mxu0
  %v1475 = vpop.f32.mrb[0].mxu0
  %v1476 = vadd.f32 0.0, %v1475
  %v1477 = vpop.f32.mrb[0].mxu0
  %1478 = vmatprep.mubr.bf16.mxu0 0
  %1479 = vmatmul.mubr.bf16.gmra.mrb[0].mxu0 %v1430
  %v1480 = vpop.f32.mrb[0].mxu0
  %v1481 = vadd.f32 0.0, %v1480
  %v1482 = vpop.f32.mrb[0].mxu0
  %v1483 = vpop.f32.mrb[0].mxu0
  %v1484 = vadd.f32 0.0, %v1483
  %v1485 = vpop.f32.mrb[0].mxu0
  %1486 = vmatprep.mubr.bf16.mxu0 0
  %1487 = vmatmul.mubr.bf16.gmra.mrb[0].mxu0 %v1433
  %v1488 = vpop.f32.mrb[0].mxu0
  %v1489 = vadd.f32 0.0, %v1488
  %v1490 = vpop.f32.mrb[0].mxu0
  %v1491 = vpop.f32.mrb[0].mxu0
  %v1492 = vadd.f32 0.0, %v1491
  %v1493 = vpop.f32.mrb[0].mxu0
  %1494 = vmatprep.mubr.bf16.mxu0 0
  %1495 = vmatmul.mubr.bf16.gmra.mrb[0].mxu0 %v1436
  %v1496 = vpop.f32.mrb[0].mxu0
  %v1497 = vadd.f32 0.0, %v1496
  %v1498 = vpop.f32.mrb[0].mxu0
  %v1499 = vpop.f32.mrb[0].mxu0
  %v1500 = vadd.f32 0.0, %v1499
  %v1501 = vpop.f32.mrb[0].mxu0
  %1502 = vdwg.mxu0
  %1503 = vrot.lane.b32.xlu0 %v1153, 112
  %v1504 = vpop.permute.xlu0 %1503
  %v1507 = vsel %vm1236, %v1419, 0
  %v1510 = vsel %vm1236, %v1420, 0
  %v1513 = vsel %vm1236, %v1421, 0
  %v1516 = vsel %vm1236, %v1422, 0
  %1518 = vmatprep.subr.bf16.mxu0 0
  %1519 = vmatpush1.bf16.msra.mxu0 %v1504
  %1520 = vmatprep.subr.bf16.mxu0 0
  %1521 = vmatpush1.bf16.msra.mxu0 0
  %1522 = vmatprep.subr.bf16.mxu0 0
  %1523 = vmatpush1.bf16.msra.mxu0 0
  %1524 = vmatprep.subr.bf16.mxu0 0
  %1525 = vmatpush1.bf16.msra.mxu0 0
  %1526 = vmatprep.subr.bf16.mxu0 0
  %1527 = vmatpush1.bf16.msra.mxu0 0
  %1528 = vmatprep.subr.bf16.mxu0 0
  %1529 = vmatpush1.bf16.msra.mxu0 0
  %1530 = vmatprep.subr.bf16.mxu0 0
  %1531 = vmatpush1.bf16.msra.mxu0 0
  %1532 = vmatprep.subr.bf16.mxu0 0
  %1533 = vmatpush1.bf16.msra.mxu0 0
  %1534 = vmatprep.subr.bf16.mxu0 0
  %1535 = vmatpush1.bf16.msra.mxu0 0
  %1536 = vmatprep.subr.bf16.mxu0 0
  %1537 = vmatpush1.bf16.msra.mxu0 0
  %1538 = vmatprep.subr.bf16.mxu0 0
  %1539 = vmatpush1.bf16.msra.mxu0 0
  %1540 = vmatprep.subr.bf16.mxu0 0
  %1541 = vmatpush1.bf16.msra.mxu0 0
  %1542 = vmatprep.subr.bf16.mxu0 0
  %1543 = vmatpush1.bf16.msra.mxu0 0
  %1544 = vmatprep.subr.bf16.mxu0 0
  %1545 = vmatpush1.bf16.msra.mxu0 0
  %1546 = vmatprep.subr.bf16.mxu0 0
  %1547 = vmatpush1.bf16.msra.mxu0 0
  %1548 = vmatprep.subr.bf16.mxu0 0
  %1549 = vmatpush1.bf16.msra.mxu0 0
  %1550 = vmatprep.mubr.bf16.mxu0 0
  %1551 = vmatmul.mubr.bf16.gmra.mrb[0].mxu0 %v1507
  %v1552 = vpop.f32.mrb[0].mxu0
  %v1553 = vadd.f32 0.0, %v1552
  %v1554 = vpop.f32.mrb[0].mxu0
  %v1555 = vpop.f32.mrb[0].mxu0
  %v1556 = vadd.f32 0.0, %v1555
  %v1557 = vpop.f32.mrb[0].mxu0
  %1558 = vmatprep.mubr.bf16.mxu0 0
  %1559 = vmatmul.mubr.bf16.gmra.mrb[0].mxu0 %v1510
  %v1560 = vpop.f32.mrb[0].mxu0
  %v1561 = vadd.f32 0.0, %v1560
  %v1562 = vpop.f32.mrb[0].mxu0
  %v1563 = vpop.f32.mrb[0].mxu0
  %v1564 = vadd.f32 0.0, %v1563
  %v1565 = vpop.f32.mrb[0].mxu0
  %1566 = vmatprep.mubr.bf16.mxu0 0
  %1567 = vmatmul.mubr.bf16.gmra.mrb[0].mxu0 %v1513
  %v1568 = vpop.f32.mrb[0].mxu0
  %v1569 = vadd.f32 0.0, %v1568
  %v1570 = vpop.f32.mrb[0].mxu0
  %v1571 = vpop.f32.mrb[0].mxu0
  %v1572 = vadd.f32 0.0, %v1571
  %v1573 = vpop.f32.mrb[0].mxu0
  %1574 = vmatprep.mubr.bf16.mxu0 0
  %1575 = vmatmul.mubr.bf16.gmra.mrb[0].mxu0 %v1516
  %v1576 = vpop.f32.mrb[0].mxu0
  %v1577 = vadd.f32 0.0, %v1576
  %v1578 = vpop.f32.mrb[0].mxu0
  %v1579 = vpop.f32.mrb[0].mxu0
  %v1580 = vadd.f32 0.0, %v1579
  %v1581 = vpop.f32.mrb[0].mxu0
  %1582 = vdwg.mxu0
  %v1583 = vmul.f32 %v1473, %v1399
  %v1584 = vmul.f32 %v1476, %v1400
  %v1585 = vmul.f32 %v1481, %v1401
  %v1586 = vmul.f32 %v1484, %v1402
  %v1587 = vmul.f32 %v1489, %v1403
  %v1588 = vmul.f32 %v1492, %v1404
  %v1589 = vmul.f32 %v1497, %v1405
  %v1590 = vmul.f32 %v1500, %v1406
  %v1591 = vmul.f32 %v1553, %v1407
  %v1592 = vmul.f32 %v1556, %v1408
  %v1593 = vmul.f32 %v1561, %v1409
  %v1594 = vmul.f32 %v1564, %v1410
  %v1595 = vmul.f32 %v1569, %v1411
  %v1596 = vmul.f32 %v1572, %v1412
  %v1597 = vmul.f32 %v1577, %v1413
  %v1598 = vmul.f32 %v1580, %v1414
  %v1599 = vpack.c.bf16 %v1584, %v1583
  %v1600 = vpack.c.bf16 %v1586, %v1585
  %v1601 = vpack.c.bf16 %v1588, %v1587
  %v1602 = vpack.c.bf16 %v1590, %v1589
  %v1603 = vpack.c.bf16 %v1592, %v1591
  %v1604 = vpack.c.bf16 %v1594, %v1593
  %v1605 = vpack.c.bf16 %v1596, %v1595
  %v1606 = vpack.c.bf16 %v1598, %v1597
  %v1611 = vunpack.c.l.b16 %v24
  %v1612 = vunpack.c.l.b16 %v25
  %v1613 = vunpack.c.l.b16 %v26
  %v1614 = vunpack.c.l.b16 %v27
  %v1615 = vpack.c.b16 %v1612, %v1611
  %v1616 = vpack.c.b16 %v1614, %v1613
  %vm1619 = vcmask 261120
  %v1621 = vsel %vm1619, %v1599, 0
  %v1624 = vsel %vm1619, %v1600, 0
  %v1627 = vsel %vm1619, %v1601, 0
  %v1630 = vsel %vm1619, %v1602, 0
  %v1633 = vsel %vm1619, %v1603, 0
  %v1636 = vsel %vm1619, %v1604, 0
  %v1639 = vsel %vm1619, %v1605, 0
  %v1642 = vsel %vm1619, %v1606, 0
  %1644 = vmatprep.subr.bf16.mxu0 0
  %1645 = vmatpush1.bf16.msra.mxu0 %v1615
  %1646 = vmatprep.subr.bf16.mxu0 0
  %1647 = vmatpush1.bf16.msra.mxu0 %v1616
  %1648 = vmatprep.subr.bf16.mxu0 0
  %1649 = vmatpush1.bf16.msra.mxu0 0
  %1650 = vmatprep.subr.bf16.mxu0 0
  %1651 = vmatpush1.bf16.msra.mxu0 0
  %1652 = vmatprep.subr.bf16.mxu0 0
  %1653 = vmatpush1.bf16.msra.mxu0 0
  %1654 = vmatprep.subr.bf16.mxu0 0
  %1655 = vmatpush1.bf16.msra.mxu0 0
  %1656 = vmatprep.subr.bf16.mxu0 0
  %1657 = vmatpush1.bf16.msra.mxu0 0
  %1658 = vmatprep.subr.bf16.mxu0 0
  %1659 = vmatpush1.bf16.msra.mxu0 0
  %1660 = vmatprep.subr.bf16.mxu0 0
  %1661 = vmatpush1.bf16.msra.mxu0 0
  %1662 = vmatprep.subr.bf16.mxu0 0
  %1663 = vmatpush1.bf16.msra.mxu0 0
  %1664 = vmatprep.subr.bf16.mxu0 0
  %1665 = vmatpush1.bf16.msra.mxu0 0
  %1666 = vmatprep.subr.bf16.mxu0 0
  %1667 = vmatpush1.bf16.msra.mxu0 0
  %1668 = vmatprep.subr.bf16.mxu0 0
  %1669 = vmatpush1.bf16.msra.mxu0 0
  %1670 = vmatprep.subr.bf16.mxu0 0
  %1671 = vmatpush1.bf16.msra.mxu0 0
  %1672 = vmatprep.subr.bf16.mxu0 0
  %1673 = vmatpush1.bf16.msra.mxu0 0
  %1674 = vmatprep.subr.bf16.mxu0 0
  %1675 = vmatpush1.bf16.msra.mxu0 0
  %1676 = vmatprep.mubr.bf16.mxu0 0
  %1677 = vmatmul.mubr.bf16.gmra.mrb[0].mxu0 %v1621
  %v1678 = vpop.f32.mrb[0].mxu0
  %v1679 = vadd.f32 0.0, %v1678
  %v1680 = vpop.f32.mrb[0].mxu0
  %v1681 = vpop.f32.mrb[0].mxu0
  %v1682 = vadd.f32 0.0, %v1681
  %v1683 = vpop.f32.mrb[0].mxu0
  %1684 = vmatprep.mubr.bf16.mxu0 0
  %1685 = vmatmul.mubr.bf16.gmra.mrb[0].mxu0 %v1624
  %v1686 = vpop.f32.mrb[0].mxu0
  %v1687 = vadd.f32 0.0, %v1686
  %v1688 = vpop.f32.mrb[0].mxu0
  %v1689 = vpop.f32.mrb[0].mxu0
  %v1690 = vadd.f32 0.0, %v1689
  %v1691 = vpop.f32.mrb[0].mxu0
  %1692 = vmatprep.mubr.bf16.mxu0 0
  %1693 = vmatmul.mubr.bf16.gmra.mrb[0].mxu0 %v1627
  %v1694 = vpop.f32.mrb[0].mxu0
  %v1695 = vadd.f32 0.0, %v1694
  %v1696 = vpop.f32.mrb[0].mxu0
  %v1697 = vpop.f32.mrb[0].mxu0
  %v1698 = vadd.f32 0.0, %v1697
  %v1699 = vpop.f32.mrb[0].mxu0
  %1700 = vmatprep.mubr.bf16.mxu0 0
  %1701 = vmatmul.mubr.bf16.gmra.mrb[0].mxu0 %v1630
  %v1702 = vpop.f32.mrb[0].mxu0
  %v1703 = vadd.f32 0.0, %v1702
  %v1704 = vpop.f32.mrb[0].mxu0
  %v1705 = vpop.f32.mrb[0].mxu0
  %v1706 = vadd.f32 0.0, %v1705
  %v1707 = vpop.f32.mrb[0].mxu0
  %1708 = vmatprep.mubr.bf16.mxu0 0
  %1709 = vmatmul.mubr.bf16.gmra.mrb[0].mxu0 %v1633
  %v1710 = vpop.f32.mrb[0].mxu0
  %v1711 = vadd.f32 0.0, %v1710
  %v1712 = vpop.f32.mrb[0].mxu0
  %v1713 = vpop.f32.mrb[0].mxu0
  %v1714 = vadd.f32 0.0, %v1713
  %v1715 = vpop.f32.mrb[0].mxu0
  %1716 = vmatprep.mubr.bf16.mxu0 0
  %1717 = vmatmul.mubr.bf16.gmra.mrb[0].mxu0 %v1636
  %v1718 = vpop.f32.mrb[0].mxu0
  %v1719 = vadd.f32 0.0, %v1718
  %v1720 = vpop.f32.mrb[0].mxu0
  %v1721 = vpop.f32.mrb[0].mxu0
  %v1722 = vadd.f32 0.0, %v1721
  %v1723 = vpop.f32.mrb[0].mxu0
  %1724 = vmatprep.mubr.bf16.mxu0 0
  %1725 = vmatmul.mubr.bf16.gmra.mrb[0].mxu0 %v1639
  %v1726 = vpop.f32.mrb[0].mxu0
  %v1727 = vadd.f32 0.0, %v1726
  %v1728 = vpop.f32.mrb[0].mxu0
  %v1729 = vpop.f32.mrb[0].mxu0
  %v1730 = vadd.f32 0.0, %v1729
  %v1731 = vpop.f32.mrb[0].mxu0
  %1732 = vmatprep.mubr.bf16.mxu0 0
  %1733 = vmatmul.mubr.bf16.gmra.mrb[0].mxu0 %v1642
  %v1734 = vpop.f32.mrb[0].mxu0
  %v1735 = vadd.f32 0.0, %v1734
  %v1736 = vpop.f32.mrb[0].mxu0
  %v1737 = vpop.f32.mrb[0].mxu0
  %v1738 = vadd.f32 0.0, %v1737
  %v1739 = vpop.f32.mrb[0].mxu0
  %1740 = vdwg.mxu0
  %1741 = vxpose.xlu0.b32.start [1/16] %v1679, 128
  %1742 = vxpose.xlu0.b32.cont [2/16] %v1682, 128
  %1743 = vxpose.xlu0.b32.cont [3/16] %v1687, 128
  %1744 = vxpose.xlu0.b32.cont [4/16] %v1690, 128
  %1745 = vxpose.xlu0.b32.cont [5/16] %v1695, 128
  %1746 = vxpose.xlu0.b32.cont [6/16] %v1698, 128
  %1747 = vxpose.xlu0.b32.cont [7/16] %v1703, 128
  %1748 = vxpose.xlu0.b32.cont [8/16] %v1706, 128
  %1749 = vxpose.xlu0.b32.cont [9/16] 0.0, 128
  %1750 = vxpose.xlu0.b32.cont [10/16] 0.0, 128
  %1751 = vxpose.xlu0.b32.cont [11/16] 0.0, 128
  %1752 = vxpose.xlu0.b32.cont [12/16] 0.0, 128
  %1753 = vxpose.xlu0.b32.cont [13/16] 0.0, 128
  %1754 = vxpose.xlu0.b32.cont [14/16] 0.0, 128
  %1755 = vxpose.xlu0.b32.cont [15/16] 0.0, 128
  %1756 = vxpose.xlu0.b32.end [16/16] 0.0, 128
  %v1757 = vpop.trf.xlu0
  %v1758 = vpop.trf.xlu0
  %v1759 = vpop.trf.xlu0
  %v1760 = vpop.trf.xlu0
  %v1761 = vpop.trf.xlu0
  %v1762 = vpop.trf.xlu0
  %v1763 = vpop.trf.xlu0
  %v1764 = vpop.trf.xlu0
  %v1765 = vpop.trf.xlu0
  %v1766 = vpop.trf.xlu0
  %v1767 = vpop.trf.xlu0
  %v1768 = vpop.trf.xlu0
  %v1769 = vpop.trf.xlu0
  %v1770 = vpop.trf.xlu0
  %v1771 = vpop.trf.xlu0
  %v1772 = vpop.trf.xlu0
  %1773 = vxpose.xlu0.b32.start [1/16] %v1711, 128
  %1774 = vxpose.xlu0.b32.cont [2/16] %v1714, 128
  %1775 = vxpose.xlu0.b32.cont [3/16] %v1719, 128
  %1776 = vxpose.xlu0.b32.cont [4/16] %v1722, 128
  %1777 = vxpose.xlu0.b32.cont [5/16] %v1727, 128
  %1778 = vxpose.xlu0.b32.cont [6/16] %v1730, 128
  %1779 = vxpose.xlu0.b32.cont [7/16] %v1735, 128
  %1780 = vxpose.xlu0.b32.cont [8/16] %v1738, 128
  %1781 = vxpose.xlu0.b32.cont [9/16] 0.0, 128
  %1782 = vxpose.xlu0.b32.cont [10/16] 0.0, 128
  %1783 = vxpose.xlu0.b32.cont [11/16] 0.0, 128
  %1784 = vxpose.xlu0.b32.cont [12/16] 0.0, 128
  %1785 = vxpose.xlu0.b32.cont [13/16] 0.0, 128
  %1786 = vxpose.xlu0.b32.cont [14/16] 0.0, 128
  %1787 = vxpose.xlu0.b32.cont [15/16] 0.0, 128
  %1788 = vxpose.xlu0.b32.end [16/16] 0.0, 128
  %v1789 = vpop.trf.xlu0
  %v1790 = vpop.trf.xlu0
  %v1791 = vpop.trf.xlu0
  %v1792 = vpop.trf.xlu0
  %v1793 = vpop.trf.xlu0
  %v1794 = vpop.trf.xlu0
  %v1795 = vpop.trf.xlu0
  %v1796 = vpop.trf.xlu0
  %v1797 = vpop.trf.xlu0
  %v1798 = vpop.trf.xlu0
  %v1799 = vpop.trf.xlu0
  %v1800 = vpop.trf.xlu0
  %v1801 = vpop.trf.xlu0
  %v1802 = vpop.trf.xlu0
  %v1803 = vpop.trf.xlu0
  %v1804 = vpop.trf.xlu0
  %v1805 = vld [vmem:[%s1] sm:$0xff]
  %v1806 = vld [vmem:[%s1 + $0x8] sm:$0xff]
  %v1807 = vld [vmem:[%s1 + $0x10] sm:$0xff]
  %v1808 = vld [vmem:[%s1 + $0x18] sm:$0xff]
  %v1809 = vld [vmem:[%s1 + $0x20] sm:$0xff]
  %v1810 = vld [vmem:[%s1 + $0x28] sm:$0xff]
  %v1811 = vld [vmem:[%s1 + $0x30] sm:$0xff]
  %v1812 = vld [vmem:[%s1 + $0x38] sm:$0xff]
  %v1813 = vld [vmem:[%s1 + $0x40] sm:$0xff]
  %v1814 = vld [vmem:[%s1 + $0x48] sm:$0xff]
  %v1815 = vld [vmem:[%s1 + $0x50] sm:$0xff]
  %v1816 = vld [vmem:[%s1 + $0x58] sm:$0xff]
  %v1817 = vld [vmem:[%s1 + $0x60] sm:$0xff]
  %v1818 = vld [vmem:[%s1 + $0x68] sm:$0xff]
  %v1819 = vld [vmem:[%s1 + $0x70] sm:$0xff]
  %v1820 = vld [vmem:[%s1 + $0x78] sm:$0xff]
  %v1821 = vadd.f32 %v1757, %v1805
  %v1822 = vadd.f32 %v1758, %v1806
  %v1823 = vadd.f32 %v1759, %v1807
  %v1824 = vadd.f32 %v1760, %v1808
  %v1825 = vadd.f32 %v1761, %v1809
  %v1826 = vadd.f32 %v1762, %v1810
  %v1827 = vadd.f32 %v1763, %v1811
  %v1828 = vadd.f32 %v1764, %v1812
  %v1829 = vadd.f32 %v1789, %v1813
  %v1830 = vadd.f32 %v1790, %v1814
  %v1831 = vadd.f32 %v1791, %v1815
  %v1832 = vadd.f32 %v1792, %v1816
  %v1833 = vadd.f32 %v1793, %v1817
  %v1834 = vadd.f32 %v1794, %v1818
  %v1835 = vadd.f32 %v1795, %v1819
  %v1836 = vadd.f32 %v1796, %v1820
  %1837 = vst.msk [vmem:[%s3] sm:$0xff] %vm140, %v1821
  %1838 = vst.msk [vmem:[%s3 + $0x8] sm:$0xff] %vm140, %v1822
  %1839 = vst.msk [vmem:[%s3 + $0x10] sm:$0xff] %vm140, %v1823
  %1840 = vst.msk [vmem:[%s3 + $0x18] sm:$0xff] %vm140, %v1824
  %1841 = vst.msk [vmem:[%s3 + $0x20] sm:$0xff] %vm140, %v1825
  %1842 = vst.msk [vmem:[%s3 + $0x28] sm:$0xff] %vm140, %v1826
  %1843 = vst.msk [vmem:[%s3 + $0x30] sm:$0xff] %vm140, %v1827
  %1844 = vst.msk [vmem:[%s3 + $0x38] sm:$0xff] %vm140, %v1828
  %1845 = vst.msk [vmem:[%s3 + $0x40] sm:$0xff] %vm140, %v1829
  %1846 = vst.msk [vmem:[%s3 + $0x48] sm:$0xff] %vm140, %v1830
  %1847 = vst.msk [vmem:[%s3 + $0x50] sm:$0xff] %vm140, %v1831
  %1848 = vst.msk [vmem:[%s3 + $0x58] sm:$0xff] %vm140, %v1832
  %1849 = vst.msk [vmem:[%s3 + $0x60] sm:$0xff] %vm140, %v1833
  %1850 = vst.msk [vmem:[%s3 + $0x68] sm:$0xff] %vm140, %v1834
  %1851 = vst.msk [vmem:[%s3 + $0x70] sm:$0xff] %vm140, %v1835
  %1852 = vst.msk [vmem:[%s3 + $0x78] sm:$0xff] %vm140, %v1836
  // Predicated region
  $region14: #{self_attention_forward.1} parent=0 // pred_check
    _
  $region15: #{self_attention_forward.1} parent=0 // pred_check_branch
    %1854 = sbr.rel (0) target = $region17
  $region16: #{self_attention_forward.1} parent=0 // pred_region
    _
  $region17: #{self_attention_forward.1} parent=0 // pred_fallthru
    _
  // Predicated region
  $region18: #{self_attention_forward.1} parent=0 // pred_check
    _
  $region19: #{self_attention_forward.1} parent=0 // pred_check_branch
    %1856 = sbr.rel (0) target = $region21
  $region20: #{self_attention_forward.1} parent=0 // pred_region
    _
  $region21: #{self_attention_forward.1} parent=0 // pred_fallthru
    _

</llo_original>
